<compile_context>
chip_gen: v5e
topology: v5e:2x2
jax: 0.10.0
libtpu: 0.0.40
codegen_flags: <defaults>
</compile_context>

<pallas_src>
from functools import lru_cache, partial

import numpy as np
import jax
import jax.numpy as jnp
from jax.experimental import pallas as pl
from jax.experimental.pallas import tpu as pltpu

# ---- stand-in for configure.toml's config['FFT'] (file not available) -------
N_FFT = 64
HOP_LENGTH = 16
WIN_LENGTH = 64
N_FREQ = N_FFT // 2 + 1                 # onesided bins = 33
_OLA_RATIO = N_FFT // HOP_LENGTH        # 4 frames overlap per sample
_CROP_COLS = (N_FFT // 2) // HOP_LENGTH  # center-crop, in hop columns (= 2)

assert N_FFT % HOP_LENGTH == 0 and (N_FFT // 2) % HOP_LENGTH == 0
assert WIN_LENGTH == N_FFT

_VMEM_LIMIT = 32 * 1024 * 1024          # safe on v5e / v6e / v7x


# ----------------------------- host-side constants ----------------------------
def _sqrt_hann_np():
    n = np.arange(WIN_LENGTH, dtype=np.float64)
    w = 0.5 - 0.5 * np.cos(2.0 * np.pi * n / WIN_LENGTH)   # periodic hann
    return np.sqrt(w)


@lru_cache(maxsize=None)
def _idft_basis_np():
    # Real irfft of a onesided spectrum as two [n_fft, F] matmul constants with the
    # sqrt-hann synthesis window, 1/N and the onesided 2x scaling folded in.
    k = np.arange(N_FREQ, dtype=np.float64)[None, :]        # [1, F]
    n = np.arange(N_FFT, dtype=np.float64)[:, None]         # [n_fft, 1]
    ang = 2.0 * np.pi * k * n / N_FFT
    scale = np.full((1, N_FREQ), 2.0)
    scale[0, 0] = 1.0
    scale[0, -1] = 1.0
    win = _sqrt_hann_np()[:, None]
    cos_t = (scale * np.cos(ang) / N_FFT) * win             # [n_fft, F]
    sin_t = (-scale * np.sin(ang) / N_FFT) * win
    return cos_t.astype(np.float32), sin_t.astype(np.float32)


@lru_cache(maxsize=None)
def _inv_env2_np(num_frames):
    # torch.istft divides by the OLA of window^2; the envelope is data independent.
    # Returned in the kernel's [hop, num_frames - 1] waveform layout.
    full_len = N_FFT + HOP_LENGTH * (num_frames - 1)
    wsq = _sqrt_hann_np() ** 2
    env = np.zeros(full_len, dtype=np.float64)
    for t in range(num_frames):
        env[t * HOP_LENGTH:t * HOP_LENGTH + N_FFT] += wsq
    half = N_FFT // 2
    env = env[half:full_len - half]
    assert np.all(env > 1e-11), "OLA envelope ~0: COLA violated for this FFT config"
    inv = (1.0 / env).astype(np.float32)                     # [hop*(T-1)]
    return np.ascontiguousarray(inv.reshape(num_frames - 1, HOP_LENGTH).T)


# ------------------------------- fused Pallas kernel ---------------------------
def _loss_kernel(wav_len, pred_ref, clean_ref, cos_ref, sin_ref, ienv_ref,
                 o_sisnr_ref, o_mse_ref, wp_ref, wc_ref):
    eps_mse = 1e-12
    eps = 1e-8
    T = pred_ref.shape[-1]

    p_re = pred_ref[0, 0]        # [F, T]
    p_im = pred_ref[0, 1]
    c_re = clean_ref[0, 0]
    c_im = clean_ref[0, 1]

    # ---- compressed-spectrum MSE partial (one log + two exp per operand) ----------
    plm = 0.5 * jnp.log(p_re * p_re + p_im * p_im + eps_mse)   # log |pred|
    clm = 0.5 * jnp.log(c_re * c_re + c_im * c_im + eps_mse)   # log |clean|
    p_inv07 = jnp.exp(-0.7 * plm)                              # |pred| ** -0.7
    c_inv07 = jnp.exp(-0.7 * clm)
    dr = p_re * p_inv07 - c_re * c_inv07
    di = p_im * p_inv07 - c_im * c_inv07
    dm = jnp.exp(0.3 * plm) - jnp.exp(0.3 * clm)               # |.| ** 0.3 difference
    mse_part = jnp.sum(30.0 * (dr * dr + di * di) + 70.0 * (dm * dm))

    # ---- iSTFT: inverse DFT + synthesis window, MXU matmuls ------------------------
    cos_t = cos_ref[...]                                       # [n_fft, F]
    sin_t = sin_ref[...]
    fp = (jnp.dot(cos_t, p_re, preferred_element_type=jnp.float32)
          + jnp.dot(sin_t, p_im, preferred_element_type=jnp.float32))   # [n_fft, T]
    fc = (jnp.dot(cos_t, c_re, preferred_element_type=jnp.float32)
          + jnp.dot(sin_t, c_im, preferred_element_type=jnp.float32))

    # ---- overlap-add into [hop, T + ratio - 1] layout (static shifted adds) --------
    wp_ref[...] = jnp.zeros_like(wp_ref)
    wc_ref[...] = jnp.zeros_like(wc_ref)
    for j in range(_OLA_RATIO):
        wp_ref[:, j:j + T] += fp[j * HOP_LENGTH:(j + 1) * HOP_LENGTH, :]
        wc_ref[:, j:j + T] += fc[j * HOP_LENGTH:(j + 1) * HOP_LENGTH, :]

    # center crop (n_fft//2 each side == _CROP_COLS hop-columns) + 1/envelope
    ienv = ienv_ref[...]                                       # [hop, T-1]
    x = wp_ref[:, _CROP_COLS:_CROP_COLS + T - 1] * ienv        # wav_ref (pred recon)
    y = wc_ref[:, _CROP_COLS:_CROP_COLS + T - 1] * ienv        # wav_out (clean recon)

    # ---- SI-SNR from 5 sufficient statistics (single pass over the waveforms) ------
    fL = jnp.float32(wav_len)
    sx = jnp.sum(x)
    sy = jnp.sum(y)
    sxx = jnp.sum(x * x)
    syy = jnp.sum(y * y)
    sxy = jnp.sum(x * y)
    dot = sxy - sx * sy / fL                                   # centered <ref, out>
    ref_en = jnp.maximum(sxx - sx * sx / fL, 0.0)              # centered energies
    out_en = jnp.maximum(syy - sy * sy / fL, 0.0)
    alpha = dot / (ref_en + eps)
    proj_en = alpha * alpha * ref_en                           # ||wav_proj||^2
    vert_en = jnp.maximum(out_en - 2.0 * alpha * dot + proj_en, 0.0)   # ||wav_vert||^2
    inv_ln10 = jnp.float32(1.0 / np.log(10.0))
    sisnr = 10.0 * inv_ln10 * (jnp.log(proj_en + eps) - jnp.log(vert_en + eps))
    # torch.std is unbiased (ddof=1) on the already-centered waveforms.
    inv_lm1 = jnp.float32(1.0 / (wav_len - 1))
    ref_std = jnp.sqrt(ref_en * inv_lm1)
    out_std = jnp.sqrt(out_en * inv_lm1)
    # NOTE: reproduces the torch expression verbatim (eps binds to the division).
    com = jnp.minimum(ref_std + eps / (out_std + eps),
                      out_std + eps / (ref_std + eps))

    o_sisnr_ref[...] = jnp.full(o_sisnr_ref.shape, sisnr * com, jnp.float32)
    o_mse_ref[...] = jnp.full(o_mse_ref.shape, mse_part, jnp.float32)


# --------------------------- loss_totally forward ------------------------------
def loss_totally(pred_stft, clean_stft):
    # pred_stft, clean_stft: [B, 2, F, T]; channel 0 = real, 1 = imag.
    pred_stft = pred_stft.astype(jnp.float32)
    clean_stft = clean_stft.astype(jnp.float32)
    B, C, F, T = pred_stft.shape
    assert C == 2 and F == N_FREQ and T >= _OLA_RATIO

    wav_len = HOP_LENGTH * (T - 1)
    cos_t, sin_t = _idft_basis_np()
    ienv2 = _inv_env2_np(T)

    spec_block = pl.BlockSpec((1, 2, F, T), lambda b: (b, 0, 0, 0))
    basis_block = pl.BlockSpec((N_FFT, F), lambda b: (0, 0))
    ienv_block = pl.BlockSpec((HOP_LENGTH, T - 1), lambda b: (0, 0))
    out_block = pl.BlockSpec((1, 8, 128), lambda b: (b, 0, 0))

    # TODO(synk): for extremely long clips (T so large that a (1,2,F,T) f32 block no
    # longer fits VMEM) the frame axis would additionally need tiling inside the grid.
    out_sisnr, out_mse = pl.pallas_call(
        partial(_loss_kernel, wav_len),
        out_shape=(jax.ShapeDtypeStruct((B, 8, 128), jnp.float32),
                   jax.ShapeDtypeStruct((B, 8, 128), jnp.float32)),
        grid=(B,),
        in_specs=[spec_block, spec_block, basis_block, basis_block, ienv_block],
        out_specs=(out_block, out_block),
        scratch_shapes=[
            pltpu.VMEM((HOP_LENGTH, T + _OLA_RATIO - 1), jnp.float32),
            pltpu.VMEM((HOP_LENGTH, T + _OLA_RATIO - 1), jnp.float32)],
        compiler_params=pltpu.CompilerParams(
            dimension_semantics=("parallel",),
            vmem_limit_bytes=_VMEM_LIMIT),
    )(pred_stft, clean_stft, jnp.asarray(cos_t), jnp.asarray(sin_t),
      jnp.asarray(ienv2))

    loss1 = -jnp.mean(out_sisnr[:, 0, 0])                        # loss_sisnr
    loss2 = jnp.sum(out_mse[:, 0, 0]) / jnp.float32(B * F * T)   # loss_mse
    return loss1 + loss2


if __name__ == "__main__":
    key = jax.random.PRNGKey(0)
    k1, k2 = jax.random.split(key)
    B, T = 2, 8
    pred = jax.random.normal(k1, (B, 2, N_FREQ, T), dtype=jnp.float32)
    clean = jax.random.normal(k2, (B, 2, N_FREQ, T), dtype=jnp.float32)
    out = jax.jit(loss_totally)(pred, clean)
    out = jax.block_until_ready(out)
    assert out.shape == () and bool(jnp.isfinite(out))
    print("KERNEL_OK")
</pallas_src>

<mosaic_0001>
module attributes {stable_mosaic.version = 11 : i64} {
  func.func @_loss_kernel(%arg0: i32, %arg1: memref<1x2x33x8xf32, #tpu.memory_space<vmem>>, %arg2: memref<1x2x33x8xf32, #tpu.memory_space<vmem>>, %arg3: memref<64x33xf32, #tpu.memory_space<vmem>>, %arg4: memref<64x33xf32, #tpu.memory_space<vmem>>, %arg5: memref<16x7xf32, #tpu.memory_space<vmem>>, %arg6: memref<1x8x128xf32, #tpu.memory_space<vmem>>, %arg7: memref<1x8x128xf32, #tpu.memory_space<vmem>>, %arg8: memref<16x11xf32, #tpu.memory_space<vmem>>, %arg9: memref<16x11xf32, #tpu.memory_space<vmem>>) attributes {dimension_semantics = [#tpu.dimension_semantics<parallel>], iteration_bounds = array<i64: 2>, scalar_prefetch = 0 : i64, scratch_operands = 2 : i64, tpu.core_type = #tpu.core_type<tc>, window_params = [{transform_indices = @transform_0, window_bounds = array<i64: 1, 2, 33, 8>}, {transform_indices = @transform_1, window_bounds = array<i64: 1, 2, 33, 8>}, {pipeline_mode = #tpu.pipeline_mode<synchronous>, transform_indices = @transform_2, window_bounds = array<i64: 64, 33>}, {pipeline_mode = #tpu.pipeline_mode<synchronous>, transform_indices = @transform_3, window_bounds = array<i64: 64, 33>}, {pipeline_mode = #tpu.pipeline_mode<synchronous>, transform_indices = @transform_4, window_bounds = array<i64: 16, 7>}, {transform_indices = @transform_5, window_bounds = array<i64: 1, 8, 128>}, {transform_indices = @transform_6, window_bounds = array<i64: 1, 8, 128>}]} {
    %c0 = arith.constant 0 : index
    %c0_0 = arith.constant 0 : index
    %c0_1 = arith.constant 0 : index
    %c0_2 = arith.constant 0 : index
    %0 = vector.load %arg1[%c0, %c0_0, %c0_1, %c0_2] : memref<1x2x33x8xf32, #tpu.memory_space<vmem>>, vector<1x1x33x8xf32>
    %1 = vector.shape_cast %0 : vector<1x1x33x8xf32> to vector<33x8xf32>
    %c0_3 = arith.constant 0 : index
    %c1 = arith.constant 1 : index
    %c0_4 = arith.constant 0 : index
    %c0_5 = arith.constant 0 : index
    %2 = vector.load %arg1[%c0_3, %c1, %c0_4, %c0_5] : memref<1x2x33x8xf32, #tpu.memory_space<vmem>>, vector<1x1x33x8xf32>
    %3 = vector.shape_cast %2 : vector<1x1x33x8xf32> to vector<33x8xf32>
    %c0_6 = arith.constant 0 : index
    %c0_7 = arith.constant 0 : index
    %c0_8 = arith.constant 0 : index
    %c0_9 = arith.constant 0 : index
    %4 = vector.load %arg2[%c0_6, %c0_7, %c0_8, %c0_9] : memref<1x2x33x8xf32, #tpu.memory_space<vmem>>, vector<1x1x33x8xf32>
    %5 = vector.shape_cast %4 : vector<1x1x33x8xf32> to vector<33x8xf32>
    %c0_10 = arith.constant 0 : index
    %c1_11 = arith.constant 1 : index
    %c0_12 = arith.constant 0 : index
    %c0_13 = arith.constant 0 : index
    %6 = vector.load %arg2[%c0_10, %c1_11, %c0_12, %c0_13] : memref<1x2x33x8xf32, #tpu.memory_space<vmem>>, vector<1x1x33x8xf32>
    %7 = vector.shape_cast %6 : vector<1x1x33x8xf32> to vector<33x8xf32>
    %8 = arith.mulf %1, %1 : vector<33x8xf32>
    %9 = arith.mulf %3, %3 : vector<33x8xf32>
    %10 = arith.addf %8, %9 : vector<33x8xf32>
    %cst = arith.constant 9.99999996E-13 : f32
    %11 = vector.broadcast %cst : f32 to vector<33x8xf32>
    %12 = arith.addf %10, %11 : vector<33x8xf32>
    %13 = math.log %12 : vector<33x8xf32>
    %cst_14 = arith.constant 5.000000e-01 : f32
    %14 = vector.broadcast %cst_14 : f32 to vector<33x8xf32>
    %15 = arith.mulf %14, %13 : vector<33x8xf32>
    %16 = arith.mulf %5, %5 : vector<33x8xf32>
    %17 = arith.mulf %7, %7 : vector<33x8xf32>
    %18 = arith.addf %16, %17 : vector<33x8xf32>
    %cst_15 = arith.constant 9.99999996E-13 : f32
    %19 = vector.broadcast %cst_15 : f32 to vector<33x8xf32>
    %20 = arith.addf %18, %19 : vector<33x8xf32>
    %21 = math.log %20 : vector<33x8xf32>
    %cst_16 = arith.constant 5.000000e-01 : f32
    %22 = vector.broadcast %cst_16 : f32 to vector<33x8xf32>
    %23 = arith.mulf %22, %21 : vector<33x8xf32>
    %cst_17 = arith.constant -0.699999988 : f32
    %24 = vector.broadcast %cst_17 : f32 to vector<33x8xf32>
    %25 = arith.mulf %24, %15 : vector<33x8xf32>
    %26 = math.exp %25 : vector<33x8xf32>
    %cst_18 = arith.constant -0.699999988 : f32
    %27 = vector.broadcast %cst_18 : f32 to vector<33x8xf32>
    %28 = arith.mulf %27, %23 : vector<33x8xf32>
    %29 = math.exp %28 : vector<33x8xf32>
    %30 = arith.mulf %1, %26 : vector<33x8xf32>
    %31 = arith.mulf %5, %29 : vector<33x8xf32>
    %32 = arith.subf %30, %31 : vector<33x8xf32>
    %33 = arith.mulf %3, %26 : vector<33x8xf32>
    %34 = arith.mulf %7, %29 : vector<33x8xf32>
    %35 = arith.subf %33, %34 : vector<33x8xf32>
    %cst_19 = arith.constant 3.000000e-01 : f32
    %36 = vector.broadcast %cst_19 : f32 to vector<33x8xf32>
    %37 = arith.mulf %36, %15 : vector<33x8xf32>
    %38 = math.exp %37 : vector<33x8xf32>
    %cst_20 = arith.constant 3.000000e-01 : f32
    %39 = vector.broadcast %cst_20 : f32 to vector<33x8xf32>
    %40 = arith.mulf %39, %23 : vector<33x8xf32>
    %41 = math.exp %40 : vector<33x8xf32>
    %42 = arith.subf %38, %41 : vector<33x8xf32>
    %43 = arith.mulf %32, %32 : vector<33x8xf32>
    %44 = arith.mulf %35, %35 : vector<33x8xf32>
    %45 = arith.addf %43, %44 : vector<33x8xf32>
    %cst_21 = arith.constant 3.000000e+01 : f32
    %46 = vector.broadcast %cst_21 : f32 to vector<33x8xf32>
    %47 = arith.mulf %46, %45 : vector<33x8xf32>
    %48 = arith.mulf %42, %42 : vector<33x8xf32>
    %cst_22 = arith.constant 7.000000e+01 : f32
    %49 = vector.broadcast %cst_22 : f32 to vector<33x8xf32>
    %50 = arith.mulf %49, %48 : vector<33x8xf32>
    %51 = arith.addf %47, %50 : vector<33x8xf32>
    %52 = vector.shape_cast %51 : vector<33x8xf32> to vector<1x33x8xf32>
    %cst_23 = arith.constant dense<0.000000e+00> : vector<1xf32>
    %53 = vector.multi_reduction <add>, %52, %cst_23 [1, 2] : vector<1x33x8xf32> to vector<1xf32>
    %54 = vector.shape_cast %53 : vector<1xf32> to vector<1x1x1xf32>
    %55 = vector.extract %54[0, 0, 0] : f32 from vector<1x1x1xf32>
    %c0_24 = arith.constant 0 : index
    %c0_25 = arith.constant 0 : index
    %56 = vector.load %arg3[%c0_24, %c0_25] : memref<64x33xf32, #tpu.memory_space<vmem>>, vector<64x33xf32>
    %c0_26 = arith.constant 0 : index
    %c0_27 = arith.constant 0 : index
    %57 = vector.load %arg4[%c0_26, %c0_27] : memref<64x33xf32, #tpu.memory_space<vmem>>, vector<64x33xf32>
    %cst_28 = arith.constant dense<0.000000e+00> : vector<64x8xf32>
    %58 = tpu.matmul %56, %1, %cst_28 {dimension_numbers = #tpu.dot_dimension_numbers<[1], [0], [0], [1], [0, 0, 1, 1], [], []>} : vector<64x33xf32>, vector<33x8xf32>, vector<64x8xf32> -> vector<64x8xf32>
    %cst_29 = arith.constant dense<0.000000e+00> : vector<64x8xf32>
    %59 = tpu.matmul %57, %3, %cst_29 {dimension_numbers = #tpu.dot_dimension_numbers<[1], [0], [0], [1], [0, 0, 1, 1], [], []>} : vector<64x33xf32>, vector<33x8xf32>, vector<64x8xf32> -> vector<64x8xf32>
    %60 = arith.addf %58, %59 : vector<64x8xf32>
    %cst_30 = arith.constant dense<0.000000e+00> : vector<64x8xf32>
    %61 = tpu.matmul %56, %5, %cst_30 {dimension_numbers = #tpu.dot_dimension_numbers<[1], [0], [0], [1], [0, 0, 1, 1], [], []>} : vector<64x33xf32>, vector<33x8xf32>, vector<64x8xf32> -> vector<64x8xf32>
    %cst_31 = arith.constant dense<0.000000e+00> : vector<64x8xf32>
    %62 = tpu.matmul %57, %7, %cst_31 {dimension_numbers = #tpu.dot_dimension_numbers<[1], [0], [0], [1], [0, 0, 1, 1], [], []>} : vector<64x33xf32>, vector<33x8xf32>, vector<64x8xf32> -> vector<64x8xf32>
    %63 = arith.addf %61, %62 : vector<64x8xf32>
    %cst_32 = arith.constant 0.000000e+00 : f32
    %64 = vector.broadcast %cst_32 : f32 to vector<16x11xf32>
    %c0_33 = arith.constant 0 : index
    %c0_34 = arith.constant 0 : index
    %65 = vector.load %arg8[%c0_33, %c0_34] : memref<16x11xf32, #tpu.memory_space<vmem>>, vector<16x11xf32>
    tpu.vector_store %arg8[%c0_33, %c0_34], %64 {strides = array<i32>} : memref<16x11xf32, #tpu.memory_space<vmem>>, vector<16x11xf32>,
    %cst_35 = arith.constant 0.000000e+00 : f32
    %66 = vector.broadcast %cst_35 : f32 to vector<16x11xf32>
    %c0_36 = arith.constant 0 : index
    %c0_37 = arith.constant 0 : index
    %67 = vector.load %arg9[%c0_36, %c0_37] : memref<16x11xf32, #tpu.memory_space<vmem>>, vector<16x11xf32>
    tpu.vector_store %arg9[%c0_36, %c0_37], %66 {strides = array<i32>} : memref<16x11xf32, #tpu.memory_space<vmem>>, vector<16x11xf32>,
    %c0_38 = arith.constant 0 : index
    %c0_39 = arith.constant 0 : index
    %68 = vector.load %arg8[%c0_38, %c0_39] : memref<16x11xf32, #tpu.memory_space<vmem>>, vector<16x8xf32>
    %69 = vector.extract_strided_slice %60 {offsets = [0, 0], sizes = [16, 8], strides = [1, 1]} : vector<64x8xf32> to vector<16x8xf32>
    %70 = arith.addf %68, %69 : vector<16x8xf32>
    %c0_40 = arith.constant 0 : index
    %c0_41 = arith.constant 0 : index
    %71 = vector.load %arg8[%c0_40, %c0_41] : memref<16x11xf32, #tpu.memory_space<vmem>>, vector<16x8xf32>
    tpu.vector_store %arg8[%c0_40, %c0_41], %70 {strides = array<i32>} : memref<16x11xf32, #tpu.memory_space<vmem>>, vector<16x8xf32>,
    %c0_42 = arith.constant 0 : index
    %c0_43 = arith.constant 0 : index
    %72 = vector.load %arg9[%c0_42, %c0_43] : memref<16x11xf32, #tpu.memory_space<vmem>>, vector<16x8xf32>
    %73 = vector.extract_strided_slice %63 {offsets = [0, 0], sizes = [16, 8], strides = [1, 1]} : vector<64x8xf32> to vector<16x8xf32>
    %74 = arith.addf %72, %73 : vector<16x8xf32>
    %c0_44 = arith.constant 0 : index
    %c0_45 = arith.constant 0 : index
    %75 = vector.load %arg9[%c0_44, %c0_45] : memref<16x11xf32, #tpu.memory_space<vmem>>, vector<16x8xf32>
    tpu.vector_store %arg9[%c0_44, %c0_45], %74 {strides = array<i32>} : memref<16x11xf32, #tpu.memory_space<vmem>>, vector<16x8xf32>,
    %c0_46 = arith.constant 0 : index
    %c1_47 = arith.constant 1 : index
    %76 = vector.load %arg8[%c0_46, %c1_47] : memref<16x11xf32, #tpu.memory_space<vmem>>, vector<16x8xf32>
    %77 = vector.extract_strided_slice %60 {offsets = [16, 0], sizes = [16, 8], strides = [1, 1]} : vector<64x8xf32> to vector<16x8xf32>
    %78 = arith.addf %76, %77 : vector<16x8xf32>
    %c0_48 = arith.constant 0 : index
    %c1_49 = arith.constant 1 : index
    %79 = vector.load %arg8[%c0_48, %c1_49] : memref<16x11xf32, #tpu.memory_space<vmem>>, vector<16x8xf32>
    tpu.vector_store %arg8[%c0_48, %c1_49], %78 {strides = array<i32>} : memref<16x11xf32, #tpu.memory_space<vmem>>, vector<16x8xf32>,
    %c0_50 = arith.constant 0 : index
    %c1_51 = arith.constant 1 : index
    %80 = vector.load %arg9[%c0_50, %c1_51] : memref<16x11xf32, #tpu.memory_space<vmem>>, vector<16x8xf32>
    %81 = vector.extract_strided_slice %63 {offsets = [16, 0], sizes = [16, 8], strides = [1, 1]} : vector<64x8xf32> to vector<16x8xf32>
    %82 = arith.addf %80, %81 : vector<16x8xf32>
    %c0_52 = arith.constant 0 : index
    %c1_53 = arith.constant 1 : index
    %83 = vector.load %arg9[%c0_52, %c1_53] : memref<16x11xf32, #tpu.memory_space<vmem>>, vector<16x8xf32>
    tpu.vector_store %arg9[%c0_52, %c1_53], %82 {strides = array<i32>} : memref<16x11xf32, #tpu.memory_space<vmem>>, vector<16x8xf32>,
    %c0_54 = arith.constant 0 : index
    %c2 = arith.constant 2 : index
    %84 = vector.load %arg8[%c0_54, %c2] : memref<16x11xf32, #tpu.memory_space<vmem>>, vector<16x8xf32>
    %85 = vector.extract_strided_slice %60 {offsets = [32, 0], sizes = [16, 8], strides = [1, 1]} : vector<64x8xf32> to vector<16x8xf32>
    %86 = arith.addf %84, %85 : vector<16x8xf32>
    %c0_55 = arith.constant 0 : index
    %c2_56 = arith.constant 2 : index
    %87 = vector.load %arg8[%c0_55, %c2_56] : memref<16x11xf32, #tpu.memory_space<vmem>>, vector<16x8xf32>
    tpu.vector_store %arg8[%c0_55, %c2_56], %86 {strides = array<i32>} : memref<16x11xf32, #tpu.memory_space<vmem>>, vector<16x8xf32>,
    %c0_57 = arith.constant 0 : index
    %c2_58 = arith.constant 2 : index
    %88 = vector.load %arg9[%c0_57, %c2_58] : memref<16x11xf32, #tpu.memory_space<vmem>>, vector<16x8xf32>
    %89 = vector.extract_strided_slice %63 {offsets = [32, 0], sizes = [16, 8], strides = [1, 1]} : vector<64x8xf32> to vector<16x8xf32>
    %90 = arith.addf %88, %89 : vector<16x8xf32>
    %c0_59 = arith.constant 0 : index
    %c2_60 = arith.constant 2 : index
    %91 = vector.load %arg9[%c0_59, %c2_60] : memref<16x11xf32, #tpu.memory_space<vmem>>, vector<16x8xf32>
    tpu.vector_store %arg9[%c0_59, %c2_60], %90 {strides = array<i32>} : memref<16x11xf32, #tpu.memory_space<vmem>>, vector<16x8xf32>,
    %c0_61 = arith.constant 0 : index
    %c3 = arith.constant 3 : index
    %92 = vector.load %arg8[%c0_61, %c3] : memref<16x11xf32, #tpu.memory_space<vmem>>, vector<16x8xf32>
    %93 = vector.extract_strided_slice %60 {offsets = [48, 0], sizes = [16, 8], strides = [1, 1]} : vector<64x8xf32> to vector<16x8xf32>
    %94 = arith.addf %92, %93 : vector<16x8xf32>
    %c0_62 = arith.constant 0 : index
    %c3_63 = arith.constant 3 : index
    %95 = vector.load %arg8[%c0_62, %c3_63] : memref<16x11xf32, #tpu.memory_space<vmem>>, vector<16x8xf32>
    tpu.vector_store %arg8[%c0_62, %c3_63], %94 {strides = array<i32>} : memref<16x11xf32, #tpu.memory_space<vmem>>, vector<16x8xf32>,
    %c0_64 = arith.constant 0 : index
    %c3_65 = arith.constant 3 : index
    %96 = vector.load %arg9[%c0_64, %c3_65] : memref<16x11xf32, #tpu.memory_space<vmem>>, vector<16x8xf32>
    %97 = vector.extract_strided_slice %63 {offsets = [48, 0], sizes = [16, 8], strides = [1, 1]} : vector<64x8xf32> to vector<16x8xf32>
    %98 = arith.addf %96, %97 : vector<16x8xf32>
    %c0_66 = arith.constant 0 : index
    %c3_67 = arith.constant 3 : index
    %99 = vector.load %arg9[%c0_66, %c3_67] : memref<16x11xf32, #tpu.memory_space<vmem>>, vector<16x8xf32>
    tpu.vector_store %arg9[%c0_66, %c3_67], %98 {strides = array<i32>} : memref<16x11xf32, #tpu.memory_space<vmem>>, vector<16x8xf32>,
    %c0_68 = arith.constant 0 : index
    %c0_69 = arith.constant 0 : index
    %100 = vector.load %arg5[%c0_68, %c0_69] : memref<16x7xf32, #tpu.memory_space<vmem>>, vector<16x7xf32>
    %c0_70 = arith.constant 0 : index
    %c2_71 = arith.constant 2 : index
    %101 = vector.load %arg8[%c0_70, %c2_71] : memref<16x11xf32, #tpu.memory_space<vmem>>, vector<16x7xf32>
    %102 = arith.mulf %101, %100 : vector<16x7xf32>
    %c0_72 = arith.constant 0 : index
    %c2_73 = arith.constant 2 : index
    %103 = vector.load %arg9[%c0_72, %c2_73] : memref<16x11xf32, #tpu.memory_space<vmem>>, vector<16x7xf32>
    %104 = arith.mulf %103, %100 : vector<16x7xf32>
    %105 = vector.shape_cast %102 : vector<16x7xf32> to vector<1x16x7xf32>
    %cst_74 = arith.constant dense<0.000000e+00> : vector<1xf32>
    %106 = vector.multi_reduction <add>, %105, %cst_74 [1, 2] : vector<1x16x7xf32> to vector<1xf32>
    %107 = vector.shape_cast %106 : vector<1xf32> to vector<1x1x1xf32>
    %108 = vector.extract %107[0, 0, 0] : f32 from vector<1x1x1xf32>
    %109 = vector.shape_cast %104 : vector<16x7xf32> to vector<1x16x7xf32>
    %cst_75 = arith.constant dense<0.000000e+00> : vector<1xf32>
    %110 = vector.multi_reduction <add>, %109, %cst_75 [1, 2] : vector<1x16x7xf32> to vector<1xf32>
    %111 = vector.shape_cast %110 : vector<1xf32> to vector<1x1x1xf32>
    %112 = vector.extract %111[0, 0, 0] : f32 from vector<1x1x1xf32>
    %113 = arith.mulf %102, %102 : vector<16x7xf32>
    %114 = vector.shape_cast %113 : vector<16x7xf32> to vector<1x16x7xf32>
    %cst_76 = arith.constant dense<0.000000e+00> : vector<1xf32>
    %115 = vector.multi_reduction <add>, %114, %cst_76 [1, 2] : vector<1x16x7xf32> to vector<1xf32>
    %116 = vector.shape_cast %115 : vector<1xf32> to vector<1x1x1xf32>
    %117 = vector.extract %116[0, 0, 0] : f32 from vector<1x1x1xf32>
    %118 = arith.mulf %104, %104 : vector<16x7xf32>
    %119 = vector.shape_cast %118 : vector<16x7xf32> to vector<1x16x7xf32>
    %cst_77 = arith.constant dense<0.000000e+00> : vector<1xf32>
    %120 = vector.multi_reduction <add>, %119, %cst_77 [1, 2] : vector<1x16x7xf32> to vector<1xf32>
    %121 = vector.shape_cast %120 : vector<1xf32> to vector<1x1x1xf32>
    %122 = vector.extract %121[0, 0, 0] : f32 from vector<1x1x1xf32>
    %123 = arith.mulf %102, %104 : vector<16x7xf32>
    %124 = vector.shape_cast %123 : vector<16x7xf32> to vector<1x16x7xf32>
    %cst_78 = arith.constant dense<0.000000e+00> : vector<1xf32>
    %125 = vector.multi_reduction <add>, %124, %cst_78 [1, 2] : vector<1x16x7xf32> to vector<1xf32>
    %126 = vector.shape_cast %125 : vector<1xf32> to vector<1x1x1xf32>
    %127 = vector.extract %126[0, 0, 0] : f32 from vector<1x1x1xf32>
    %128 = arith.mulf %108, %112 : f32
    %cst_79 = arith.constant 1.120000e+02 : f32
    %129 = arith.divf %128, %cst_79 : f32
    %130 = arith.subf %127, %129 : f32
    %131 = arith.mulf %108, %108 : f32
    %cst_80 = arith.constant 1.120000e+02 : f32
    %132 = arith.divf %131, %cst_80 : f32
    %133 = arith.subf %117, %132 : f32
    %cst_81 = arith.constant 0.000000e+00 : f32
    %134 = arith.maximumf %133, %cst_81 : f32
    %135 = arith.mulf %112, %112 : f32
    %cst_82 = arith.constant 1.120000e+02 : f32
    %136 = arith.divf %135, %cst_82 : f32
    %137 = arith.subf %122, %136 : f32
    %cst_83 = arith.constant 0.000000e+00 : f32
    %138 = arith.maximumf %137, %cst_83 : f32
    %cst_84 = arith.constant 9.99999993E-9 : f32
    %139 = arith.addf %134, %cst_84 : f32
    %140 = arith.divf %130, %139 : f32
    %141 = arith.mulf %140, %140 : f32
    %142 = arith.mulf %141, %134 : f32
    %cst_85 = arith.constant 2.000000e+00 : f32
    %143 = arith.mulf %cst_85, %140 : f32
    %144 = arith.mulf %143, %130 : f32
    %145 = arith.subf %138, %144 : f32
    %146 = arith.addf %145, %142 : f32
    %cst_86 = arith.constant 0.000000e+00 : f32
    %147 = arith.maximumf %146, %cst_86 : f32
    %cst_87 = arith.constant 1.000000e+01 : f32
    %cst_88 = arith.constant 0.434294492 : f32
    %148 = arith.mulf %cst_87, %cst_88 : f32
    %cst_89 = arith.constant 9.99999993E-9 : f32
    %149 = arith.addf %142, %cst_89 : f32
    %150 = math.log %149 : f32
    %cst_90 = arith.constant 9.99999993E-9 : f32
    %151 = arith.addf %147, %cst_90 : f32
    %152 = math.log %151 : f32
    %153 = arith.subf %150, %152 : f32
    %154 = arith.mulf %148, %153 : f32
    %cst_91 = arith.constant 0.00900900922 : f32
    %155 = arith.mulf %134, %cst_91 : f32
    %156 = math.sqrt %155 : f32
    %cst_92 = arith.constant 0.00900900922 : f32
    %157 = arith.mulf %138, %cst_92 : f32
    %158 = math.sqrt %157 : f32
    %cst_93 = arith.constant 9.99999993E-9 : f32
    %159 = arith.addf %158, %cst_93 : f32
    %cst_94 = arith.constant 9.99999993E-9 : f32
    %160 = arith.divf %cst_94, %159 : f32
    %161 = arith.addf %156, %160 : f32
    %cst_95 = arith.constant 9.99999993E-9 : f32
    %162 = arith.addf %156, %cst_95 : f32
    %cst_96 = arith.constant 9.99999993E-9 : f32
    %163 = arith.divf %cst_96, %162 : f32
    %164 = arith.addf %158, %163 : f32
    %165 = arith.minimumf %161, %164 : f32
    %166 = arith.mulf %154, %165 : f32
    %167 = vector.broadcast %166 : f32 to vector<1x8x128xf32>
    %c0_97 = arith.constant 0 : index
    %c0_98 = arith.constant 0 : index
    %c0_99 = arith.constant 0 : index
    %168 = vector.load %arg6[%c0_97, %c0_98, %c0_99] : memref<1x8x128xf32, #tpu.memory_space<vmem>>, vector<1x8x128xf32>
    tpu.vector_store %arg6[%c0_97, %c0_98, %c0_99], %167 {strides = array<i32>} : memref<1x8x128xf32, #tpu.memory_space<vmem>>, vector<1x8x128xf32>,
    %169 = vector.broadcast %55 : f32 to vector<1x8x128xf32>
    %c0_100 = arith.constant 0 : index
    %c0_101 = arith.constant 0 : index
    %c0_102 = arith.constant 0 : index
    %170 = vector.load %arg7[%c0_100, %c0_101, %c0_102] : memref<1x8x128xf32, #tpu.memory_space<vmem>>, vector<1x8x128xf32>
    tpu.vector_store %arg7[%c0_100, %c0_101, %c0_102], %169 {strides = array<i32>} : memref<1x8x128xf32, #tpu.memory_space<vmem>>, vector<1x8x128xf32>,
    return
  }
  func.func @transform_0(%arg0: i32) -> (i32, i32, i32, i32) {
    %c0_i32 = arith.constant 0 : i32
    %c0_i32_0 = arith.constant 0 : i32
    %c0_i32_1 = arith.constant 0 : i32
    %c0_i32_2 = arith.constant 0 : i32
    return %arg0, %c0_i32, %c0_i32_0, %c0_i32_1 : i32, i32, i32, i32
  }
  func.func @transform_1(%arg0: i32) -> (i32, i32, i32, i32) {
    %c0_i32 = arith.constant 0 : i32
    %c0_i32_0 = arith.constant 0 : i32
    %c0_i32_1 = arith.constant 0 : i32
    %c0_i32_2 = arith.constant 0 : i32
    return %arg0, %c0_i32, %c0_i32_0, %c0_i32_1 : i32, i32, i32, i32
  }
  func.func @transform_2(%arg0: i32) -> (i32, i32) {
    %c0_i32 = arith.constant 0 : i32
    %c0_i32_0 = arith.constant 0 : i32
    %c0_i32_1 = arith.constant 0 : i32
    return %c0_i32, %c0_i32_0 : i32, i32
  }
  func.func @transform_3(%arg0: i32) -> (i32, i32) {
    %c0_i32 = arith.constant 0 : i32
    %c0_i32_0 = arith.constant 0 : i32
    %c0_i32_1 = arith.constant 0 : i32
    return %c0_i32, %c0_i32_0 : i32, i32
  }
  func.func @transform_4(%arg0: i32) -> (i32, i32) {
    %c0_i32 = arith.constant 0 : i32
    %c0_i32_0 = arith.constant 0 : i32
    %c0_i32_1 = arith.constant 0 : i32
    return %c0_i32, %c0_i32_0 : i32, i32
  }
  func.func @transform_5(%arg0: i32) -> (i32, i32, i32) {
    %c0_i32 = arith.constant 0 : i32
    %c0_i32_0 = arith.constant 0 : i32
    %c0_i32_1 = arith.constant 0 : i32
    return %arg0, %c0_i32, %c0_i32_0 : i32, i32, i32
  }
  func.func @transform_6(%arg0: i32) -> (i32, i32, i32) {
    %c0_i32 = arith.constant 0 : i32
    %c0_i32_0 = arith.constant 0 : i32
    %c0_i32_1 = arith.constant 0 : i32
    return %arg0, %c0_i32, %c0_i32_0 : i32, i32, i32
  }
}

</mosaic_0001>

<llo_original>
// kernel: loss_totally.1
$region0: #{loss_totally.1}
  #allocation0 [shape = 'u32[]', space=smem, size = 0x4, offset = 0x4, fixed_abs, tag = 'smem constant byte address 0x4 - core index']
  #allocation1 [shape = 'u32[72,128]{1,0:T(1,128)}', space=vmem, size = 0x9000, scoped, tag = 'internal scratch']
  #allocation2 [shape = 'f32[16,11]{1,0:T(8,128)}', space=vmem, size = 0x2000, scoped, tag = 'scratch operand']
  #allocation3 [shape = 'f32[16,11]{1,0:T(8,128)}', space=vmem, size = 0x2000, scoped, tag = 'scratch operand']
  %s0 = inlined_call_operand.vmem [shape: f32[2,2,33,8], index: 0, kind: input, shape index: {}]
  %s1 = inlined_call_operand.vmem [shape: f32[2,2,33,8], index: 1, kind: input, shape index: {}]
  %s2 = inlined_call_operand.vmem [shape: f32[64,33], index: 2, kind: input, shape index: {}]
  %s3 = inlined_call_operand.vmem [shape: f32[64,33], index: 3, kind: input, shape index: {}]
  %s4 = inlined_call_operand.vmem [shape: f32[16,7], index: 4, kind: input, shape index: {}]
  %s5 = inlined_call_operand.vmem [shape: f32[2,8,128], index: 5, kind: output, shape index: {0}]
  %s6 = inlined_call_operand.vmem [shape: f32[2,8,128], index: 6, kind: output, shape index: {1}]
  %7 = xla_tuple %s5, %s6
  %s8 = sld [smem:[#allocation0]]
  $region61: #{loss_totally.1} parent=0
    _
  %s10 = ssub.s32 1, %s8
  %s11 = scalar_select 0, %s10, %s8
  loop: start=0, step=1, limit=4
  $region2: #{loss_totally.1} parent=0 // loop_pre_header
    _
  $region3: #{loss_totally.1} parent=0 // loop_header
    %s13 = sphi 0, %s17
    %p14 = scmp.ge.s32.totalorder %s13, 4
    %s23 = sphi 0, %s25
    %s26 = sphi 0, %s23
    %s27 = sphi 0, %s26
    %s43 = sphi 0, %s27
    %s49 = sphi 0, %s51
    %s52 = sphi 0, %s49
    %s53 = sphi 0, %s52
    %s69 = sphi 0, %s53
    %s73 = sphi 0, %s73
    %s75 = sphi 0, %s73
    %s76 = sphi 0, %s75
    %s90 = sphi 0, %s76
    %s94 = sphi 0, %s94
    %s96 = sphi 0, %s94
    %s97 = sphi 0, %s96
    %s111 = sphi 0, %s97
    %s115 = sphi 0, %s115
    %s117 = sphi 0, %s115
    %s118 = sphi 0, %s117
    %s132 = sphi 0, %s118
    %s138 = sphi 0, %s140
    %s141 = sphi 0, %s138
    %s142 = sphi 0, %s141
    %s158 = sphi 0, %s142
    %s164 = sphi 0, %s166
    %s167 = sphi 0, %s164
    %s168 = sphi 0, %s167
    %s184 = sphi 0, %s168
  $region4: #{loss_totally.1} parent=0 // loop_header_branch
    %16 = sbr.rel (%p14) target = $region8
  $region5: #{loss_totally.1} parent=0 // loop_body
    %s18 = ssub.s32 %s13, 1
    %s19 = ssub.s32 %s13, 2
    %s20 = sadd.s32 %s13, 1
    %s21 = ssub.s32 %s13, %s20
    %p22 = scmp.eq.s32.totalorder %s21, 0
    %s24 = sadd.s32 %s23, 1
    %s25 = scalar_select %p22, %s23, %s24
    %p28 = pneg %p22
    %p29 = scmp.eq.s32.totalorder %s13, 1
    %p30 = por %p28, %p29
    %p31 = scmp.ne.s32.totalorder %s23, %s26
    %p32 = scmp.eq.s32.totalorder %s13, 0
    %p33 = por %p31, %p32
    %p34 = scmp.ne.s32.totalorder %s23, %s26
    %p35 = scmp.eq.s32.totalorder %s18, 1
    %p36 = por %p34, %p35
    %p37 = scmp.ne.s32.totalorder %s26, %s27
    %p38 = scmp.eq.s32.totalorder %s18, 0
    %p39 = por %p37, %p38
    %p40 = scmp.ne.s32.totalorder %s26, %s27
    %p41 = scmp.eq.s32.totalorder %s19, 1
    %p42 = por %p40, %p41
    %p44 = scmp.ne.s32.totalorder %s27, %s43
    %p45 = scmp.eq.s32.totalorder %s19, 0
    %p46 = por %p44, %p45
    %s47 = ssub.s32 %s13, %s20
    %p48 = scmp.eq.s32.totalorder %s47, 0
    %s50 = sadd.s32 %s49, 1
    %s51 = scalar_select %p48, %s49, %s50
    %p54 = pneg %p48
    %p55 = scmp.eq.s32.totalorder %s13, 1
    %p56 = por %p54, %p55
    %p57 = scmp.ne.s32.totalorder %s49, %s52
    %p58 = scmp.eq.s32.totalorder %s13, 0
    %p59 = por %p57, %p58
    %p60 = scmp.ne.s32.totalorder %s49, %s52
    %p61 = scmp.eq.s32.totalorder %s18, 1
    %p62 = por %p60, %p61
    %p63 = scmp.ne.s32.totalorder %s52, %s53
    %p64 = scmp.eq.s32.totalorder %s18, 0
    %p65 = por %p63, %p64
    %p66 = scmp.ne.s32.totalorder %s52, %s53
    %p67 = scmp.eq.s32.totalorder %s19, 1
    %p68 = por %p66, %p67
    %p70 = scmp.ne.s32.totalorder %s53, %s69
    %p71 = scmp.eq.s32.totalorder %s19, 0
    %p72 = por %p70, %p71
    %s74 = sadd.s32 %s73, 1
    %p77 = scmp.eq.s32.totalorder %s13, 1
    %p78 = scmp.ne.s32.totalorder %s73, %s75
    %p79 = scmp.eq.s32.totalorder %s13, 0
    %p80 = por %p78, %p79
    %p81 = scmp.ne.s32.totalorder %s73, %s75
    %p82 = scmp.eq.s32.totalorder %s18, 1
    %p83 = por %p81, %p82
    %p84 = scmp.ne.s32.totalorder %s75, %s76
    %p85 = scmp.eq.s32.totalorder %s18, 0
    %p86 = por %p84, %p85
    %p87 = scmp.ne.s32.totalorder %s75, %s76
    %p88 = scmp.eq.s32.totalorder %s19, 1
    %p89 = por %p87, %p88
    %p91 = scmp.ne.s32.totalorder %s76, %s90
    %p92 = scmp.eq.s32.totalorder %s19, 0
    %p93 = por %p91, %p92
    %s95 = sadd.s32 %s94, 1
    %p98 = scmp.eq.s32.totalorder %s13, 1
    %p99 = scmp.ne.s32.totalorder %s94, %s96
    %p100 = scmp.eq.s32.totalorder %s13, 0
    %p101 = por %p99, %p100
    %p102 = scmp.ne.s32.totalorder %s94, %s96
    %p103 = scmp.eq.s32.totalorder %s18, 1
    %p104 = por %p102, %p103
    %p105 = scmp.ne.s32.totalorder %s96, %s97
    %p106 = scmp.eq.s32.totalorder %s18, 0
    %p107 = por %p105, %p106
    %p108 = scmp.ne.s32.totalorder %s96, %s97
    %p109 = scmp.eq.s32.totalorder %s19, 1
    %p110 = por %p108, %p109
    %p112 = scmp.ne.s32.totalorder %s97, %s111
    %p113 = scmp.eq.s32.totalorder %s19, 0
    %p114 = por %p112, %p113
    %s116 = sadd.s32 %s115, 1
    %p119 = scmp.eq.s32.totalorder %s13, 1
    %p120 = scmp.ne.s32.totalorder %s115, %s117
    %p121 = scmp.eq.s32.totalorder %s13, 0
    %p122 = por %p120, %p121
    %p123 = scmp.ne.s32.totalorder %s115, %s117
    %p124 = scmp.eq.s32.totalorder %s18, 1
    %p125 = por %p123, %p124
    %p126 = scmp.ne.s32.totalorder %s117, %s118
    %p127 = scmp.eq.s32.totalorder %s18, 0
    %p128 = por %p126, %p127
    %p129 = scmp.ne.s32.totalorder %s117, %s118
    %p130 = scmp.eq.s32.totalorder %s19, 1
    %p131 = por %p129, %p130
    %p133 = scmp.ne.s32.totalorder %s118, %s132
    %p134 = scmp.eq.s32.totalorder %s19, 0
    %p135 = por %p133, %p134
    %s136 = ssub.s32 %s13, %s20
    %p137 = scmp.eq.s32.totalorder %s136, 0
    %s139 = sadd.s32 %s138, 1
    %s140 = scalar_select %p137, %s138, %s139
    %p143 = pneg %p137
    %p144 = scmp.eq.s32.totalorder %s13, 1
    %p145 = por %p143, %p144
    %p146 = scmp.ne.s32.totalorder %s138, %s141
    %p147 = scmp.eq.s32.totalorder %s13, 0
    %p148 = por %p146, %p147
    %p149 = scmp.ne.s32.totalorder %s138, %s141
    %p150 = scmp.eq.s32.totalorder %s18, 1
    %p151 = por %p149, %p150
    %p152 = scmp.ne.s32.totalorder %s141, %s142
    %p153 = scmp.eq.s32.totalorder %s18, 0
    %p154 = por %p152, %p153
    %p155 = scmp.ne.s32.totalorder %s141, %s142
    %p156 = scmp.eq.s32.totalorder %s19, 1
    %p157 = por %p155, %p156
    %p159 = scmp.ne.s32.totalorder %s142, %s158
    %p160 = scmp.eq.s32.totalorder %s19, 0
    %p161 = por %p159, %p160
    %s162 = ssub.s32 %s13, %s20
    %p163 = scmp.eq.s32.totalorder %s162, 0
    %s165 = sadd.s32 %s164, 1
    %s166 = scalar_select %p163, %s164, %s165
    %p169 = pneg %p163
    %p170 = scmp.eq.s32.totalorder %s13, 1
    %p171 = por %p169, %p170
    %p172 = scmp.ne.s32.totalorder %s164, %s167
    %p173 = scmp.eq.s32.totalorder %s13, 0
    %p174 = por %p172, %p173
    %p175 = scmp.ne.s32.totalorder %s164, %s167
    %p176 = scmp.eq.s32.totalorder %s18, 1
    %p177 = por %p175, %p176
    %p178 = scmp.ne.s32.totalorder %s167, %s168
    %p179 = scmp.eq.s32.totalorder %s18, 0
    %p180 = por %p178, %p179
    %p181 = scmp.ne.s32.totalorder %s167, %s168
    %p182 = scmp.eq.s32.totalorder %s19, 1
    %p183 = por %p181, %p182
    %p185 = scmp.ne.s32.totalorder %s168, %s184
    %p186 = scmp.eq.s32.totalorder %s19, 0
    %p187 = por %p185, %p186
    %p188 = scmp.le.s32.totalorder 1, %s13
    %p189 = scmp.lt.s32.totalorder %s13, 3
    %p190 = pnand %p188, %p189
    %p191 = pneg %p190
    // Predicated region
    $region9: #{loss_totally.1} parent=5 // pred_check
      _
    $region10: #{loss_totally.1} parent=5 // pred_check_branch
      %193 = sbr.rel (%p190) target = $region12
    $region11: #{loss_totally.1} parent=5 // pred_region
      %s194 = ssub.s32 %s13, 1
      // Predicated region
      $region13: #{loss_totally.1} parent=11 // pred_check
        %p195 = pneg %p86
      $region14: #{loss_totally.1} parent=11 // pred_check_branch
        %197 = sbr.rel (%p195) target = $region16
      $region15: #{loss_totally.1} parent=11 // pred_region
        _
      $region16: #{loss_totally.1} parent=11 // pred_fallthru
        _
      // Predicated region
      $region17: #{loss_totally.1} parent=11 // pred_check
        %p198 = pneg %p107
      $region18: #{loss_totally.1} parent=11 // pred_check_branch
        %200 = sbr.rel (%p198) target = $region20
      $region19: #{loss_totally.1} parent=11 // pred_region
        _
      $region20: #{loss_totally.1} parent=11 // pred_fallthru
        _
      // Predicated region
      $region21: #{loss_totally.1} parent=11 // pred_check
        %p201 = pneg %p128
      $region22: #{loss_totally.1} parent=11 // pred_check_branch
        %203 = sbr.rel (%p201) target = $region24
      $region23: #{loss_totally.1} parent=11 // pred_region
        _
      $region24: #{loss_totally.1} parent=11 // pred_fallthru
        _
    $region12: #{loss_totally.1} parent=5 // pred_fallthru
      _
    %p204 = scmp.lt.s32.totalorder %s13, 2
    // Predicated region
    $region25: #{loss_totally.1} parent=5 // pred_check
      %p205 = pneg %p204
    $region26: #{loss_totally.1} parent=5 // pred_check_branch
      %207 = sbr.rel (%p205) target = $region28
    $region27: #{loss_totally.1} parent=5 // pred_region
      // Predicated region
      $region29: #{loss_totally.1} parent=27 // pred_check
        %p208 = pneg %p33
      $region30: #{loss_totally.1} parent=27 // pred_check_branch
        %210 = sbr.rel (%p208) target = $region32
      $region31: #{loss_totally.1} parent=27 // pred_region
        %p211 = scmp.lt.s32.totalorder %s13, 1
        %s212 = scalar_select %p211, %s13, 1
        %s213 = smul.addr %s212, 10
        %s214 = smul.addr %s213, 8
        %s215 = scalar_lea.vmem %s0, %s214
      $region32: #{loss_totally.1} parent=27 // pred_fallthru
        _
      // Predicated region
      $region33: #{loss_totally.1} parent=27 // pred_check
        %p216 = pneg %p59
      $region34: #{loss_totally.1} parent=27 // pred_check_branch
        %218 = sbr.rel (%p216) target = $region36
      $region35: #{loss_totally.1} parent=27 // pred_region
        %p219 = scmp.lt.s32.totalorder %s13, 1
        %s220 = scalar_select %p219, %s13, 1
        %s221 = smul.addr %s220, 10
        %s222 = smul.addr %s221, 8
        %s223 = scalar_lea.vmem %s1, %s222
      $region36: #{loss_totally.1} parent=27 // pred_fallthru
        _
    $region28: #{loss_totally.1} parent=5 // pred_fallthru
      _
    %p224 = scmp.le.s32.totalorder 1, %s13
    %p225 = scmp.lt.s32.totalorder %s13, 3
    %p226 = pnand %p224, %p225
    %p227 = pneg %p226
    // Predicated region
    $region37: #{loss_totally.1} parent=5 // pred_check
      _
    $region38: #{loss_totally.1} parent=5 // pred_check_branch
      %229 = sbr.rel (%p226) target = $region40
    $region39: #{loss_totally.1} parent=5 // pred_region
      %s230 = ssub.s32 %s13, 1
      %p231 = scmp.lt.s32.totalorder %s18, 1
      %s232 = scalar_select %p231, %s18, 1
      %s233 = smul.addr %s232, 10
      %s234 = smul.addr %s233, 8
      %s235 = scalar_lea.vmem %s0, %s234
      %p236 = pneg %p39
      %p237 = pneg %p36
      %p238 = scmp.lt.s32.totalorder %s18, 1
      %s239 = scalar_select %p238, %s18, 1
      %s240 = smul.addr %s239, 10
      %s241 = smul.addr %s240, 8
      %s242 = scalar_lea.vmem %s1, %s241
      %p243 = pneg %p65
      %p244 = pneg %p62
      %p245 = pneg %p86
      %p246 = pneg %p83
      %p247 = pneg %p107
      %p248 = pneg %p104
      %p249 = pneg %p128
      %p250 = pneg %p125
      %p251 = pneg %p154
      %p252 = pneg %p151
      %p253 = scmp.lt.s32.totalorder %s18, 1
      %s254 = scalar_select %p253, %s18, 1
      %s255 = smul.addr %s254, 8
      %s256 = scalar_lea.vmem %s5, %s255
      %p257 = pneg %p180
      %p258 = pneg %p177
      %p259 = scmp.lt.s32.totalorder %s18, 1
      %s260 = scalar_select %p259, %s18, 1
      %s261 = smul.addr %s260, 8
      %s262 = scalar_lea.vmem %s6, %s261
      %p263 = scmp.lt.s32.totalorder %s18, 1
      %s264 = scalar_select %p263, %s18, 1
      %s265 = smul.addr %s264, 10
      %s266 = smul.addr %s265, 8
      %s267 = scalar_lea.vmem %s0, %s266
      %p268 = scmp.lt.s32.totalorder %s18, 1
      %s269 = scalar_select %p268, %s18, 1
      %s270 = smul.addr %s269, 10
      %s271 = smul.addr %s270, 8
      %s272 = scalar_lea.vmem %s1, %s271
      %p273 = scmp.lt.s32.totalorder %s18, 1
      %s274 = scalar_select %p273, %s18, 1
      %s275 = smul.addr %s274, 8
      %s276 = scalar_lea.vmem %s5, %s275
      %p277 = scmp.lt.s32.totalorder %s18, 1
      %s278 = scalar_select %p277, %s18, 1
      %s279 = smul.addr %s278, 8
      %s280 = scalar_lea.vmem %s6, %s279
      %v281 = vld [vmem:[%s267] sm:$0xff]
      %v282 = vld [vmem:[%s267 + $0x8] sm:$0xff]
      %v283 = vld [vmem:[%s267 + $0x10] sm:$0xff]
      %v284 = vld [vmem:[%s267 + $0x18] sm:$0xff]
      %v285 = vld [vmem:[%s267 + $0x20] sm:$0x1]
      %s286 = scalar_lea.vmem %s267, 40
      %v287 = vld [vmem:[%s286] sm:$0xff]
      %v288 = vld [vmem:[%s286 + $0x8] sm:$0xff]
      %v289 = vld [vmem:[%s286 + $0x10] sm:$0xff]
      %v290 = vld [vmem:[%s286 + $0x18] sm:$0xff]
      %v291 = vld [vmem:[%s286 + $0x20] sm:$0x1]
      %v292 = vld [vmem:[%s272] sm:$0xff]
      %v293 = vld [vmem:[%s272 + $0x8] sm:$0xff]
      %v294 = vld [vmem:[%s272 + $0x10] sm:$0xff]
      %v295 = vld [vmem:[%s272 + $0x18] sm:$0xff]
      %v296 = vld [vmem:[%s272 + $0x20] sm:$0x1]
      %s297 = scalar_lea.vmem %s272, 40
      %v298 = vld [vmem:[%s297] sm:$0xff]
      %v299 = vld [vmem:[%s297 + $0x8] sm:$0xff]
      %v300 = vld [vmem:[%s297 + $0x10] sm:$0xff]
      %v301 = vld [vmem:[%s297 + $0x18] sm:$0xff]
      %v302 = vld [vmem:[%s297 + $0x20] sm:$0x1]
      %v303 = vmul.f32 %v281, %v281
      %v304 = vmul.f32 %v282, %v282
      %v305 = vmul.f32 %v283, %v283
      %v306 = vmul.f32 %v284, %v284
      %v307 = vmul.f32 %v285, %v285
      %v308 = vmul.f32 %v287, %v287
      %v309 = vmul.f32 %v288, %v288
      %v310 = vmul.f32 %v289, %v289
      %v311 = vmul.f32 %v290, %v290
      %v312 = vmul.f32 %v291, %v291
      %v313 = vadd.f32 %v303, %v308
      %v314 = vadd.f32 %v304, %v309
      %v315 = vadd.f32 %v305, %v310
      %v316 = vadd.f32 %v306, %v311
      %v317 = vadd.f32 %v307, %v312
      %v318 = vadd.f32 %v313, 1e-12
      %v319 = vadd.f32 %v314, 1e-12
      %v320 = vadd.f32 %v315, 1e-12
      %v321 = vadd.f32 %v316, 1e-12
      %v322 = vadd.f32 %v317, 1e-12
      %v323 = vlog2.pop %v318
      %v324 = vmul.f32 %v323, 0.6931472
      %v325 = vlog2.pop %v319
      %v326 = vmul.f32 %v325, 0.6931472
      %v327 = vlog2.pop %v320
      %v328 = vmul.f32 %v327, 0.6931472
      %v329 = vlog2.pop %v321
      %v330 = vmul.f32 %v329, 0.6931472
      %v331 = vlog2.pop %v322
      %v332 = vmul.f32 %v331, 0.6931472
      %v333 = vmul.f32 %v324, 0.5
      %v334 = vmul.f32 %v326, 0.5
      %v335 = vmul.f32 %v328, 0.5
      %v336 = vmul.f32 %v330, 0.5
      %v337 = vmul.f32 %v332, 0.5
      %v338 = vmul.f32 %v292, %v292
      %v339 = vmul.f32 %v293, %v293
      %v340 = vmul.f32 %v294, %v294
      %v341 = vmul.f32 %v295, %v295
      %v342 = vmul.f32 %v296, %v296
      %v343 = vmul.f32 %v298, %v298
      %v344 = vmul.f32 %v299, %v299
      %v345 = vmul.f32 %v300, %v300
      %v346 = vmul.f32 %v301, %v301
      %v347 = vmul.f32 %v302, %v302
      %v348 = vadd.f32 %v338, %v343
      %v349 = vadd.f32 %v339, %v344
      %v350 = vadd.f32 %v340, %v345
      %v351 = vadd.f32 %v341, %v346
      %v352 = vadd.f32 %v342, %v347
      %v353 = vadd.f32 %v348, 1e-12
      %v354 = vadd.f32 %v349, 1e-12
      %v355 = vadd.f32 %v350, 1e-12
      %v356 = vadd.f32 %v351, 1e-12
      %v357 = vadd.f32 %v352, 1e-12
      %v358 = vlog2.pop %v353
      %v359 = vmul.f32 %v358, 0.6931472
      %v360 = vlog2.pop %v354
      %v361 = vmul.f32 %v360, 0.6931472
      %v362 = vlog2.pop %v355
      %v363 = vmul.f32 %v362, 0.6931472
      %v364 = vlog2.pop %v356
      %v365 = vmul.f32 %v364, 0.6931472
      %v366 = vlog2.pop %v357
      %v367 = vmul.f32 %v366, 0.6931472
      %v368 = vmul.f32 %v359, 0.5
      %v369 = vmul.f32 %v361, 0.5
      %v370 = vmul.f32 %v363, 0.5
      %v371 = vmul.f32 %v365, 0.5
      %v372 = vmul.f32 %v367, 0.5
      %v373 = vmul.f32 %v333, -0.7
      %v374 = vmul.f32 %v334, -0.7
      %v375 = vmul.f32 %v335, -0.7
      %v376 = vmul.f32 %v336, -0.7
      %v377 = vmul.f32 %v337, -0.7
      %v378 = vmul.f32 %v373, 1.442695
      %v379 = vpow.pop %v378
      %v380 = vmul.f32 %v374, 1.442695
      %v381 = vpow.pop %v380
      %v382 = vmul.f32 %v375, 1.442695
      %v383 = vpow.pop %v382
      %v384 = vmul.f32 %v376, 1.442695
      %v385 = vpow.pop %v384
      %v386 = vmul.f32 %v377, 1.442695
      %v387 = vpow.pop %v386
      %v388 = vmul.f32 %v368, -0.7
      %v389 = vmul.f32 %v369, -0.7
      %v390 = vmul.f32 %v370, -0.7
      %v391 = vmul.f32 %v371, -0.7
      %v392 = vmul.f32 %v372, -0.7
      %v393 = vmul.f32 %v388, 1.442695
      %v394 = vpow.pop %v393
      %v395 = vmul.f32 %v389, 1.442695
      %v396 = vpow.pop %v395
      %v397 = vmul.f32 %v390, 1.442695
      %v398 = vpow.pop %v397
      %v399 = vmul.f32 %v391, 1.442695
      %v400 = vpow.pop %v399
      %v401 = vmul.f32 %v392, 1.442695
      %v402 = vpow.pop %v401
      %v403 = vmul.f32 %v281, %v379
      %v404 = vmul.f32 %v282, %v381
      %v405 = vmul.f32 %v283, %v383
      %v406 = vmul.f32 %v284, %v385
      %v407 = vmul.f32 %v285, %v387
      %v408 = vmul.f32 %v292, %v394
      %v409 = vmul.f32 %v293, %v396
      %v410 = vmul.f32 %v294, %v398
      %v411 = vmul.f32 %v295, %v400
      %v412 = vmul.f32 %v296, %v402
      %v413 = vsub.f32 %v403, %v408
      %v414 = vsub.f32 %v404, %v409
      %v415 = vsub.f32 %v405, %v410
      %v416 = vsub.f32 %v406, %v411
      %v417 = vsub.f32 %v407, %v412
      %v418 = vmul.f32 %v287, %v379
      %v419 = vmul.f32 %v288, %v381
      %v420 = vmul.f32 %v289, %v383
      %v421 = vmul.f32 %v290, %v385
      %v422 = vmul.f32 %v291, %v387
      %v423 = vmul.f32 %v298, %v394
      %v424 = vmul.f32 %v299, %v396
      %v425 = vmul.f32 %v300, %v398
      %v426 = vmul.f32 %v301, %v400
      %v427 = vmul.f32 %v302, %v402
      %v428 = vsub.f32 %v418, %v423
      %v429 = vsub.f32 %v419, %v424
      %v430 = vsub.f32 %v420, %v425
      %v431 = vsub.f32 %v421, %v426
      %v432 = vsub.f32 %v422, %v427
      %v433 = vmul.f32 %v333, 0.3
      %v434 = vmul.f32 %v334, 0.3
      %v435 = vmul.f32 %v335, 0.3
      %v436 = vmul.f32 %v336, 0.3
      %v437 = vmul.f32 %v337, 0.3
      %v438 = vmul.f32 %v433, 1.442695
      %v439 = vpow.pop %v438
      %v440 = vmul.f32 %v434, 1.442695
      %v441 = vpow.pop %v440
      %v442 = vmul.f32 %v435, 1.442695
      %v443 = vpow.pop %v442
      %v444 = vmul.f32 %v436, 1.442695
      %v445 = vpow.pop %v444
      %v446 = vmul.f32 %v437, 1.442695
      %v447 = vpow.pop %v446
      %v448 = vmul.f32 %v368, 0.3
      %v449 = vmul.f32 %v369, 0.3
      %v450 = vmul.f32 %v370, 0.3
      %v451 = vmul.f32 %v371, 0.3
      %v452 = vmul.f32 %v372, 0.3
      %v453 = vmul.f32 %v448, 1.442695
      %v454 = vpow.pop %v453
      %v455 = vmul.f32 %v449, 1.442695
      %v456 = vpow.pop %v455
      %v457 = vmul.f32 %v450, 1.442695
      %v458 = vpow.pop %v457
      %v459 = vmul.f32 %v451, 1.442695
      %v460 = vpow.pop %v459
      %v461 = vmul.f32 %v452, 1.442695
      %v462 = vpow.pop %v461
      %v463 = vsub.f32 %v439, %v454
      %v464 = vsub.f32 %v441, %v456
      %v465 = vsub.f32 %v443, %v458
      %v466 = vsub.f32 %v445, %v460
      %v467 = vsub.f32 %v447, %v462
      %v468 = vmul.f32 %v413, %v413
      %v469 = vmul.f32 %v414, %v414
      %v470 = vmul.f32 %v415, %v415
      %v471 = vmul.f32 %v416, %v416
      %v472 = vmul.f32 %v417, %v417
      %v473 = vmul.f32 %v428, %v428
      %v474 = vmul.f32 %v429, %v429
      %v475 = vmul.f32 %v430, %v430
      %v476 = vmul.f32 %v431, %v431
      %v477 = vmul.f32 %v432, %v432
      %v478 = vadd.f32 %v468, %v473
      %v479 = vadd.f32 %v469, %v474
      %v480 = vadd.f32 %v470, %v475
      %v481 = vadd.f32 %v471, %v476
      %v482 = vadd.f32 %v472, %v477
      %v483 = vmul.f32 %v478, 30.0
      %v484 = vmul.f32 %v479, 30.0
      %v485 = vmul.f32 %v480, 30.0
      %v486 = vmul.f32 %v481, 30.0
      %v487 = vmul.f32 %v482, 30.0
      %v488 = vmul.f32 %v463, %v463
      %v489 = vmul.f32 %v464, %v464
      %v490 = vmul.f32 %v465, %v465
      %v491 = vmul.f32 %v466, %v466
      %v492 = vmul.f32 %v467, %v467
      %v493 = vmul.f32 %v488, 70.0
      %v494 = vmul.f32 %v489, 70.0
      %v495 = vmul.f32 %v490, 70.0
      %v496 = vmul.f32 %v491, 70.0
      %v497 = vmul.f32 %v492, 70.0
      %v498 = vadd.f32 %v483, %v493
      %v499 = vadd.f32 %v484, %v494
      %v500 = vadd.f32 %v485, %v495
      %v501 = vadd.f32 %v486, %v496
      %v502 = vadd.f32 %v487, %v497
      %vm503 = vcmask 64512
      %v504 = vsel %vm503, %v498, 0.0
      %v505 = vsel %vm503, %v499, 0.0
      %v506 = vadd.f32 %v504, %v505
      %v507 = vsel %vm503, %v500, 0.0
      %v508 = vadd.f32 %v506, %v507
      %v509 = vsel %vm503, %v501, 0.0
      %v510 = vadd.f32 %v508, %v509
      %vm511 = vcmask 57344
      %v512 = vsel %vm511, %v502, 0.0
      %v513 = vadd.f32 %v510, %v512
      %514 = vadd.xlane.f32.xlu0 %v513
      %v515 = vpop.xlane.xlu0 %514
      %v516 = vrot.slane %v515, 4
      %v517 = vadd.f32 %v515, %v516
      %v518 = vrot.slane %v517, 2
      %v519 = vadd.f32 %v517, %v518
      %v520 = vrot.slane %v519, 1
      %v521 = vadd.f32 %v519, %v520
      %s522 = vtos %v521
      %v523 = vld [vmem:[%s2] sm:$0xff]
      %v524 = vld [vmem:[%s2 + $0x8] sm:$0xff]
      %v525 = vld [vmem:[%s2 + $0x10] sm:$0xff]
      %v526 = vld [vmem:[%s2 + $0x18] sm:$0xff]
      %v527 = vld [vmem:[%s2 + $0x20] sm:$0xff]
      %v528 = vld [vmem:[%s2 + $0x28] sm:$0xff]
      %v529 = vld [vmem:[%s2 + $0x30] sm:$0xff]
      %v530 = vld [vmem:[%s2 + $0x38] sm:$0xff]
      %v531 = vld [vmem:[%s3] sm:$0xff]
      %v532 = vld [vmem:[%s3 + $0x8] sm:$0xff]
      %v533 = vld [vmem:[%s3 + $0x10] sm:$0xff]
      %v534 = vld [vmem:[%s3 + $0x18] sm:$0xff]
      %v535 = vld [vmem:[%s3 + $0x20] sm:$0xff]
      %v536 = vld [vmem:[%s3 + $0x28] sm:$0xff]
      %v537 = vld [vmem:[%s3 + $0x30] sm:$0xff]
      %v538 = vld [vmem:[%s3 + $0x38] sm:$0xff]
      %vm539 = vcmask 269312
      %v541 = vsel %vm539, %v531, 0
      %v544 = vsel %vm539, %v532, 0
      %v547 = vsel %vm539, %v533, 0
      %v550 = vsel %vm539, %v534, 0
      %v553 = vsel %vm539, %v535, 0
      %v556 = vsel %vm539, %v536, 0
      %v559 = vsel %vm539, %v537, 0
      %v562 = vsel %vm539, %v538, 0
      %vm564 = vcmask 1040384
      %v566 = vsel %vm564, %v291, 0
      %568 = vmatpush.msra.mxu0 0.0
      %569 = vmatpush.msra.mxu0 0.0
      %570 = vmatpush.msra.mxu0 0.0
      %571 = vmatpush.msra.mxu0 0.0
      %572 = vmatpush.msra.mxu0 0.0
      %573 = vmatpush.msra.mxu0 0.0
      %574 = vmatpush.msra.mxu0 0.0
      %575 = vmatpush.msra.mxu0 0.0
      %576 = vmatpush.msra.mxu0 0.0
      %577 = vmatpush.msra.mxu0 0.0
      %578 = vmatpush.msra.mxu0 0.0
      %579 = vmatpush.msra.mxu0 %v566
      %580 = vmatpush.msra.mxu0 %v290
      %581 = vmatpush.msra.mxu0 %v289
      %582 = vmatpush.msra.mxu0 %v288
      %583 = vmatpush.msra.mxu0 %v287
      %584 = vmatmul.f32.gmra.mxu0 %v541
      %v585 = vpop.f32.mrf.mxu0
      %v586 = vadd.f32 0.0, %v585
      %587 = vmatmul.f32.gmra.mxu0 %v544
      %v588 = vpop.f32.mrf.mxu0
      %v589 = vadd.f32 0.0, %v588
      %590 = vmatmul.f32.gmra.mxu0 %v547
      %v591 = vpop.f32.mrf.mxu0
      %v592 = vadd.f32 0.0, %v591
      %593 = vmatmul.f32.gmra.mxu0 %v550
      %v594 = vpop.f32.mrf.mxu0
      %v595 = vadd.f32 0.0, %v594
      %596 = vmatmul.f32.gmra.mxu0 %v553
      %v597 = vpop.f32.mrf.mxu0
      %v598 = vadd.f32 0.0, %v597
      %599 = vmatmul.f32.gmra.mxu0 %v556
      %v600 = vpop.f32.mrf.mxu0
      %v601 = vadd.f32 0.0, %v600
      %602 = vmatmul.f32.gmra.mxu0 %v559
      %v603 = vpop.f32.mrf.mxu0
      %v604 = vadd.f32 0.0, %v603
      %605 = vmatmul.f32.gmra.mxu0 %v562
      %v606 = vpop.f32.mrf.mxu0
      %v607 = vadd.f32 0.0, %v606
      %608 = vdwg.mxu0
      %v610 = vsel %vm539, %v523, 0
      %v613 = vsel %vm539, %v524, 0
      %v616 = vsel %vm539, %v525, 0
      %v619 = vsel %vm539, %v526, 0
      %v622 = vsel %vm539, %v527, 0
      %v625 = vsel %vm539, %v528, 0
      %v628 = vsel %vm539, %v529, 0
      %v631 = vsel %vm539, %v530, 0
      %v634 = vsel %vm564, %v285, 0
      %636 = vmatpush.msra.mxu0 0.0
      %637 = vmatpush.msra.mxu0 0.0
      %638 = vmatpush.msra.mxu0 0.0
      %639 = vmatpush.msra.mxu0 0.0
      %640 = vmatpush.msra.mxu0 0.0
      %641 = vmatpush.msra.mxu0 0.0
      %642 = vmatpush.msra.mxu0 0.0
      %643 = vmatpush.msra.mxu0 0.0
      %644 = vmatpush.msra.mxu0 0.0
      %645 = vmatpush.msra.mxu0 0.0
      %646 = vmatpush.msra.mxu0 0.0
      %647 = vmatpush.msra.mxu0 %v634
      %648 = vmatpush.msra.mxu0 %v284
      %649 = vmatpush.msra.mxu0 %v283
      %650 = vmatpush.msra.mxu0 %v282
      %651 = vmatpush.msra.mxu0 %v281
      %652 = vmatmul.f32.gmra.mxu0 %v610
      %v653 = vpop.f32.mrf.mxu0
      %v654 = vadd.f32 %v586, %v653
      %655 = vmatmul.f32.gmra.mxu0 %v613
      %v656 = vpop.f32.mrf.mxu0
      %v657 = vadd.f32 %v589, %v656
      %658 = vmatmul.f32.gmra.mxu0 %v616
      %v659 = vpop.f32.mrf.mxu0
      %v660 = vadd.f32 %v592, %v659
      %661 = vmatmul.f32.gmra.mxu0 %v619
      %v662 = vpop.f32.mrf.mxu0
      %v663 = vadd.f32 %v595, %v662
      %664 = vmatmul.f32.gmra.mxu0 %v622
      %v665 = vpop.f32.mrf.mxu0
      %v666 = vadd.f32 %v598, %v665
      %667 = vmatmul.f32.gmra.mxu0 %v625
      %v668 = vpop.f32.mrf.mxu0
      %v669 = vadd.f32 %v601, %v668
      %670 = vmatmul.f32.gmra.mxu0 %v628
      %v671 = vpop.f32.mrf.mxu0
      %v672 = vadd.f32 %v604, %v671
      %673 = vmatmul.f32.gmra.mxu0 %v631
      %v674 = vpop.f32.mrf.mxu0
      %v675 = vadd.f32 %v607, %v674
      %676 = vdwg.mxu0
      %v678 = vsel %vm564, %v302, 0
      %680 = vmatpush.msra.mxu0 0.0
      %681 = vmatpush.msra.mxu0 0.0
      %682 = vmatpush.msra.mxu0 0.0
      %683 = vmatpush.msra.mxu0 0.0
      %684 = vmatpush.msra.mxu0 0.0
      %685 = vmatpush.msra.mxu0 0.0
      %686 = vmatpush.msra.mxu0 0.0
      %687 = vmatpush.msra.mxu0 0.0
      %688 = vmatpush.msra.mxu0 0.0
      %689 = vmatpush.msra.mxu0 0.0
      %690 = vmatpush.msra.mxu0 0.0
      %691 = vmatpush.msra.mxu0 %v678
      %692 = vmatpush.msra.mxu0 %v301
      %693 = vmatpush.msra.mxu0 %v300
      %694 = vmatpush.msra.mxu0 %v299
      %695 = vmatpush.msra.mxu0 %v298
      %696 = vmatmul.f32.gmra.mxu0 %v541
      %v697 = vpop.f32.mrf.mxu0
      %v698 = vadd.f32 0.0, %v697
      %699 = vmatmul.f32.gmra.mxu0 %v544
      %v700 = vpop.f32.mrf.mxu0
      %v701 = vadd.f32 0.0, %v700
      %702 = vmatmul.f32.gmra.mxu0 %v547
      %v703 = vpop.f32.mrf.mxu0
      %v704 = vadd.f32 0.0, %v703
      %705 = vmatmul.f32.gmra.mxu0 %v550
      %v706 = vpop.f32.mrf.mxu0
      %v707 = vadd.f32 0.0, %v706
      %708 = vmatmul.f32.gmra.mxu0 %v553
      %v709 = vpop.f32.mrf.mxu0
      %v710 = vadd.f32 0.0, %v709
      %711 = vmatmul.f32.gmra.mxu0 %v556
      %v712 = vpop.f32.mrf.mxu0
      %v713 = vadd.f32 0.0, %v712
      %714 = vmatmul.f32.gmra.mxu0 %v559
      %v715 = vpop.f32.mrf.mxu0
      %v716 = vadd.f32 0.0, %v715
      %717 = vmatmul.f32.gmra.mxu0 %v562
      %v718 = vpop.f32.mrf.mxu0
      %v719 = vadd.f32 0.0, %v718
      %720 = vdwg.mxu0
      %v722 = vsel %vm564, %v296, 0
      %724 = vmatpush.msra.mxu0 0.0
      %725 = vmatpush.msra.mxu0 0.0
      %726 = vmatpush.msra.mxu0 0.0
      %727 = vmatpush.msra.mxu0 0.0
      %728 = vmatpush.msra.mxu0 0.0
      %729 = vmatpush.msra.mxu0 0.0
      %730 = vmatpush.msra.mxu0 0.0
      %731 = vmatpush.msra.mxu0 0.0
      %732 = vmatpush.msra.mxu0 0.0
      %733 = vmatpush.msra.mxu0 0.0
      %734 = vmatpush.msra.mxu0 0.0
      %735 = vmatpush.msra.mxu0 %v722
      %736 = vmatpush.msra.mxu0 %v295
      %737 = vmatpush.msra.mxu0 %v294
      %738 = vmatpush.msra.mxu0 %v293
      %739 = vmatpush.msra.mxu0 %v292
      %740 = vmatmul.f32.gmra.mxu0 %v610
      %v741 = vpop.f32.mrf.mxu0
      %v742 = vadd.f32 %v698, %v741
      %743 = vmatmul.f32.gmra.mxu0 %v613
      %v744 = vpop.f32.mrf.mxu0
      %v745 = vadd.f32 %v701, %v744
      %746 = vmatmul.f32.gmra.mxu0 %v616
      %v747 = vpop.f32.mrf.mxu0
      %v748 = vadd.f32 %v704, %v747
      %749 = vmatmul.f32.gmra.mxu0 %v619
      %v750 = vpop.f32.mrf.mxu0
      %v751 = vadd.f32 %v707, %v750
      %752 = vmatmul.f32.gmra.mxu0 %v622
      %v753 = vpop.f32.mrf.mxu0
      %v754 = vadd.f32 %v710, %v753
      %755 = vmatmul.f32.gmra.mxu0 %v625
      %v756 = vpop.f32.mrf.mxu0
      %v757 = vadd.f32 %v713, %v756
      %758 = vmatmul.f32.gmra.mxu0 %v628
      %v759 = vpop.f32.mrf.mxu0
      %v760 = vadd.f32 %v716, %v759
      %761 = vmatmul.f32.gmra.mxu0 %v631
      %v762 = vpop.f32.mrf.mxu0
      %v763 = vadd.f32 %v719, %v762
      %764 = vdwg.mxu0
      %vm765 = vcmask 89088
      %766 = vst.msk [vmem:[#allocation2] sm:$0xff] %vm765, 0.0
      %767 = vst.msk [vmem:[#allocation2 + $0x8] sm:$0xff] %vm765, 0.0
      %768 = vst.msk [vmem:[#allocation3] sm:$0xff] %vm765, 0.0
      %769 = vst.msk [vmem:[#allocation3 + $0x8] sm:$0xff] %vm765, 0.0
      %v770 = vld [vmem:[#allocation2] sm:$0xff]
      %v771 = vld [vmem:[#allocation2 + $0x8] sm:$0xff]
      %v772 = vadd.f32 %v770, %v654
      %v773 = vadd.f32 %v771, %v657
      %774 = vst.msk [vmem:[#allocation2] sm:$0xff] %vm503, %v772
      %775 = vst.msk [vmem:[#allocation2 + $0x8] sm:$0xff] %vm503, %v773
      %v776 = vld [vmem:[#allocation3] sm:$0xff]
      %v777 = vld [vmem:[#allocation3 + $0x8] sm:$0xff]
      %v778 = vadd.f32 %v776, %v742
      %v779 = vadd.f32 %v777, %v745
      %780 = vst.msk [vmem:[#allocation3] sm:$0xff] %vm503, %v778
      %781 = vst.msk [vmem:[#allocation3 + $0x8] sm:$0xff] %vm503, %v779
      %v782 = vld [vmem:[#allocation2] sm:$0xff]
      %v783 = vld [vmem:[#allocation2 + $0x8] sm:$0xff]
      %786 = vrot.lane.b32.xlu0 %v660, 1
      %v787 = vpop.permute.xlu0 %786
      %788 = vrot.lane.b32.xlu0 %v663, 1
      %v789 = vpop.permute.xlu0 %788
      %v792 = vadd.f32 %v782, %v787
      %v793 = vadd.f32 %v783, %v789
      %vm794 = vcmask 72712
      %795 = vst.msk [vmem:[#allocation2] sm:$0xff] %vm794, %v792
      %796 = vst.msk [vmem:[#allocation2 + $0x8] sm:$0xff] %vm794, %v793
      %v797 = vld [vmem:[#allocation3] sm:$0xff]
      %v798 = vld [vmem:[#allocation3 + $0x8] sm:$0xff]
      %801 = vrot.lane.b32.xlu0 %v748, 1
      %v802 = vpop.permute.xlu0 %801
      %803 = vrot.lane.b32.xlu0 %v751, 1
      %v804 = vpop.permute.xlu0 %803
      %v807 = vadd.f32 %v797, %v802
      %v808 = vadd.f32 %v798, %v804
      %809 = vst.msk [vmem:[#allocation3] sm:$0xff] %vm794, %v807
      %810 = vst.msk [vmem:[#allocation3 + $0x8] sm:$0xff] %vm794, %v808
      %v811 = vld [vmem:[#allocation2] sm:$0xff]
      %v812 = vld [vmem:[#allocation2 + $0x8] sm:$0xff]
      %815 = vrot.lane.b32.xlu0 %v666, 2
      %v816 = vpop.permute.xlu0 %815
      %817 = vrot.lane.b32.xlu0 %v669, 2
      %v818 = vpop.permute.xlu0 %817
      %v821 = vadd.f32 %v811, %v816
      %v822 = vadd.f32 %v812, %v818
      %vm823 = vcmask 80912
      %824 = vst.msk [vmem:[#allocation2] sm:$0xff] %vm823, %v821
      %825 = vst.msk [vmem:[#allocation2 + $0x8] sm:$0xff] %vm823, %v822
      %v826 = vld [vmem:[#allocation3] sm:$0xff]
      %v827 = vld [vmem:[#allocation3 + $0x8] sm:$0xff]
      %830 = vrot.lane.b32.xlu0 %v754, 2
      %v831 = vpop.permute.xlu0 %830
      %832 = vrot.lane.b32.xlu0 %v757, 2
      %v833 = vpop.permute.xlu0 %832
      %v836 = vadd.f32 %v826, %v831
      %v837 = vadd.f32 %v827, %v833
      %838 = vst.msk [vmem:[#allocation3] sm:$0xff] %vm823, %v836
      %839 = vst.msk [vmem:[#allocation3 + $0x8] sm:$0xff] %vm823, %v837
      %v840 = vld [vmem:[#allocation2] sm:$0xff]
      %v841 = vld [vmem:[#allocation2 + $0x8] sm:$0xff]
      %844 = vrot.lane.b32.xlu0 %v672, 3
      %v845 = vpop.permute.xlu0 %844
      %846 = vrot.lane.b32.xlu0 %v675, 3
      %v847 = vpop.permute.xlu0 %846
      %v850 = vadd.f32 %v840, %v845
      %v851 = vadd.f32 %v841, %v847
      %vm852 = vcmask 89112
      %853 = vst.msk [vmem:[#allocation2] sm:$0xff] %vm852, %v850
      %854 = vst.msk [vmem:[#allocation2 + $0x8] sm:$0xff] %vm852, %v851
      %v855 = vld [vmem:[#allocation3] sm:$0xff]
      %v856 = vld [vmem:[#allocation3 + $0x8] sm:$0xff]
      %859 = vrot.lane.b32.xlu0 %v760, 3
      %v860 = vpop.permute.xlu0 %859
      %861 = vrot.lane.b32.xlu0 %v763, 3
      %v862 = vpop.permute.xlu0 %861
      %v865 = vadd.f32 %v855, %v860
      %v866 = vadd.f32 %v856, %v862
      %867 = vst.msk [vmem:[#allocation3] sm:$0xff] %vm852, %v865
      %868 = vst.msk [vmem:[#allocation3 + $0x8] sm:$0xff] %vm852, %v866
      %v869 = vld [vmem:[%s4] sm:$0xff]
      %v870 = vld [vmem:[%s4 + $0x8] sm:$0xff]
      %v871 = vld [vmem:[#allocation2] sm:$0xff]
      %v872 = vld [vmem:[#allocation2 + $0x8] sm:$0xff]
      %875 = vrot.lane.b32.xlu0 %v869, 2
      %v876 = vpop.permute.xlu0 %875
      %877 = vrot.lane.b32.xlu0 %v870, 2
      %v878 = vpop.permute.xlu0 %877
      %v881 = vmul.f32 %v871, %v876
      %v882 = vmul.f32 %v872, %v878
      %v883 = vld [vmem:[#allocation3] sm:$0xff]
      %v884 = vld [vmem:[#allocation3 + $0x8] sm:$0xff]
      %v885 = vmul.f32 %v883, %v876
      %v886 = vmul.f32 %v884, %v878
      %889 = vrot.lane.b32.xlu0 %v881, 126
      %v890 = vpop.permute.xlu0 %889
      %891 = vrot.lane.b32.xlu0 %v882, 126
      %v892 = vpop.permute.xlu0 %891
      %vm895 = vcmask 56320
      %v896 = vsel %vm895, %v890, 0.0
      %v897 = vsel %vm895, %v892, 0.0
      %v898 = vadd.f32 %v896, %v897
      %899 = vadd.xlane.f32.xlu0 %v898
      %v900 = vpop.xlane.xlu0 %899
      %v901 = vrot.slane %v900, 4
      %v902 = vadd.f32 %v900, %v901
      %v903 = vrot.slane %v902, 2
      %v904 = vadd.f32 %v902, %v903
      %v905 = vrot.slane %v904, 1
      %v906 = vadd.f32 %v904, %v905
      %s907 = vtos %v906
      %910 = vrot.lane.b32.xlu0 %v885, 126
      %v911 = vpop.permute.xlu0 %910
      %912 = vrot.lane.b32.xlu0 %v886, 126
      %v913 = vpop.permute.xlu0 %912
      %v916 = vsel %vm895, %v911, 0.0
      %v917 = vsel %vm895, %v913, 0.0
      %v918 = vadd.f32 %v916, %v917
      %919 = vadd.xlane.f32.xlu0 %v918
      %v920 = vpop.xlane.xlu0 %919
      %v921 = vrot.slane %v920, 4
      %v922 = vadd.f32 %v920, %v921
      %v923 = vrot.slane %v922, 2
      %v924 = vadd.f32 %v922, %v923
      %v925 = vrot.slane %v924, 1
      %v926 = vadd.f32 %v924, %v925
      %s927 = vtos %v926
      %v928 = vmul.f32 %v881, %v881
      %v929 = vmul.f32 %v882, %v882
      %932 = vrot.lane.b32.xlu0 %v928, 126
      %v933 = vpop.permute.xlu0 %932
      %934 = vrot.lane.b32.xlu0 %v929, 126
      %v935 = vpop.permute.xlu0 %934
      %v938 = vsel %vm895, %v933, 0.0
      %v939 = vsel %vm895, %v935, 0.0
      %v940 = vadd.f32 %v938, %v939
      %941 = vadd.xlane.f32.xlu0 %v940
      %v942 = vpop.xlane.xlu0 %941
      %v943 = vrot.slane %v942, 4
      %v944 = vadd.f32 %v942, %v943
      %v945 = vrot.slane %v944, 2
      %v946 = vadd.f32 %v944, %v945
      %v947 = vrot.slane %v946, 1
      %v948 = vadd.f32 %v946, %v947
      %s949 = vtos %v948
      %v950 = vmul.f32 %v885, %v885
      %v951 = vmul.f32 %v886, %v886
      %954 = vrot.lane.b32.xlu0 %v950, 126
      %v955 = vpop.permute.xlu0 %954
      %956 = vrot.lane.b32.xlu0 %v951, 126
      %v957 = vpop.permute.xlu0 %956
      %v960 = vsel %vm895, %v955, 0.0
      %v961 = vsel %vm895, %v957, 0.0
      %v962 = vadd.f32 %v960, %v961
      %963 = vadd.xlane.f32.xlu0 %v962
      %v964 = vpop.xlane.xlu0 %963
      %v965 = vrot.slane %v964, 4
      %v966 = vadd.f32 %v964, %v965
      %v967 = vrot.slane %v966, 2
      %v968 = vadd.f32 %v966, %v967
      %v969 = vrot.slane %v968, 1
      %v970 = vadd.f32 %v968, %v969
      %s971 = vtos %v970
      %v972 = vmul.f32 %v881, %v885
      %v973 = vmul.f32 %v882, %v886
      %976 = vrot.lane.b32.xlu0 %v972, 126
      %v977 = vpop.permute.xlu0 %976
      %978 = vrot.lane.b32.xlu0 %v973, 126
      %v979 = vpop.permute.xlu0 %978
      %v982 = vsel %vm895, %v977, 0.0
      %v983 = vsel %vm895, %v979, 0.0
      %v984 = vadd.f32 %v982, %v983
      %985 = vadd.xlane.f32.xlu0 %v984
      %v986 = vpop.xlane.xlu0 %985
      %v987 = vrot.slane %v986, 4
      %v988 = vadd.f32 %v986, %v987
      %v989 = vrot.slane %v988, 2
      %v990 = vadd.f32 %v988, %v989
      %v991 = vrot.slane %v990, 1
      %v992 = vadd.f32 %v990, %v991
      %s993 = vtos %v992
      %s994 = smul.f32 %s907, %s927
      %v995 = vrcp.pop 112.0
      %v996 = vmul.f32 112.0, %v995
      %v997 = vsub.f32 1.0, %v996
      %v998 = vmul.f32 %v995, %v997
      %v999 = vadd.f32 %v995, %v998
      %vm1000 = vweird.f32 %v995
      %v1001 = vsel %vm1000, %v995, %v999
      %s1002 = vtos %v1001
      %s1003 = smul.f32 %s994, %s1002
      %s1004 = ssub.f32 %s993, %s1003
      %s1005 = smul.f32 %s907, %s907
      %v1006 = vrcp.pop 112.0
      %v1007 = vmul.f32 112.0, %v1006
      %v1008 = vsub.f32 1.0, %v1007
      %v1009 = vmul.f32 %v1006, %v1008
      %v1010 = vadd.f32 %v1006, %v1009
      %vm1011 = vweird.f32 %v1006
      %v1012 = vsel %vm1011, %v1006, %v1010
      %s1013 = vtos %v1012
      %s1014 = smul.f32 %s1005, %s1013
      %s1015 = ssub.f32 %s949, %s1014
      %s1016 = smax.f32 %s1015, 0.0
      %s1017 = smul.f32 %s927, %s927
      %v1018 = vrcp.pop 112.0
      %v1019 = vmul.f32 112.0, %v1018
      %v1020 = vsub.f32 1.0, %v1019
      %v1021 = vmul.f32 %v1018, %v1020
      %v1022 = vadd.f32 %v1018, %v1021
      %vm1023 = vweird.f32 %v1018
      %v1024 = vsel %vm1023, %v1018, %v1022
      %s1025 = vtos %v1024
      %s1026 = smul.f32 %s1017, %s1025
      %s1027 = ssub.f32 %s971, %s1026
      %s1028 = smax.f32 %s1027, 0.0
      %s1029 = sadd.f32 %s1016, 1e-08
      %v1030 = vstv %s1029
      %v1031 = vrcp.pop %v1030
      %v1032 = vmul.f32 %v1030, %v1031
      %v1033 = vsub.f32 1.0, %v1032
      %v1034 = vmul.f32 %v1031, %v1033
      %v1035 = vadd.f32 %v1031, %v1034
      %vm1036 = vweird.f32 %v1030
      %vm1037 = vweird.f32 %v1031
      %vm1038 = vmor %vm1036, %vm1037
      %v1039 = vsel %vm1038, %v1031, %v1035
      %v1040 = vand.u32 2147483647, %v1030
      %vm1041 = vcmp.eq.f32.partialorder %v1040, 8.507059e+37
      %v1042 = vand.u32 %v1030, 2147483648
      %v1043 = vor.u32 1.1754944e-38, %v1042
      %v1044 = vsel %vm1041, %v1043, %v1039
      %s1045 = vtos %v1044
      %s1046 = smul.f32 %s1004, %s1045
      %s1047 = smul.f32 %s1046, %s1046
      %s1048 = smul.f32 %s1047, %s1016
      %s1049 = smul.f32 %s1046, 2.0
      %s1050 = smul.f32 %s1049, %s1004
      %s1051 = ssub.f32 %s1028, %s1050
      %s1052 = sadd.f32 %s1051, %s1048
      %s1053 = smax.f32 %s1052, 0.0
      %s1054 = sadd.f32 %s1048, 1e-08
      %v1055 = vstv %s1054
      %v1056 = vlog2.pop %v1055
      %v1057 = vmul.f32 %v1056, 0.6931472
      %s1058 = vtos %v1057
      %s1059 = sadd.f32 %s1053, 1e-08
      %v1060 = vstv %s1059
      %v1061 = vlog2.pop %v1060
      %v1062 = vmul.f32 %v1061, 0.6931472
      %s1063 = vtos %v1062
      %s1064 = ssub.f32 %s1058, %s1063
      %s1065 = smul.f32 %s1064, 4.342945
      %s1066 = smul.f32 %s1016, 0.009009009
      %v1067 = vstv %s1066
      %v1068 = vrsqrt.pop %v1067
      %v1069 = vmul.f32 %v1068, %v1067
      %v1070 = vmul.f32 %v1069, %v1068
      %v1071 = vmul.f32 0.5, %v1070
      %v1072 = vsub.f32 1.5, %v1071
      %v1073 = vmul.f32 %v1068, %v1072
      %v1074 = vmul.f32 %v1067, %v1073
      %vm1075 = vcmp.eq.f32.partialorder %v1067, inf
      %v1076 = vsel %vm1075, %v1067, %v1074
      %vm1077 = vcmp.eq.f32.partialorder %v1067, 0.0
      %v1078 = vand.u32 %v1067, 2147483648
      %v1079 = vsel %vm1077, %v1078, %v1076
      %s1080 = vtos %v1079
      %s1081 = smul.f32 %s1028, 0.009009009
      %v1082 = vstv %s1081
      %v1083 = vrsqrt.pop %v1082
      %v1084 = vmul.f32 %v1083, %v1082
      %v1085 = vmul.f32 %v1084, %v1083
      %v1086 = vmul.f32 0.5, %v1085
      %v1087 = vsub.f32 1.5, %v1086
      %v1088 = vmul.f32 %v1083, %v1087
      %v1089 = vmul.f32 %v1082, %v1088
      %vm1090 = vcmp.eq.f32.partialorder %v1082, inf
      %v1091 = vsel %vm1090, %v1082, %v1089
      %vm1092 = vcmp.eq.f32.partialorder %v1082, 0.0
      %v1093 = vand.u32 %v1082, 2147483648
      %v1094 = vsel %vm1092, %v1093, %v1091
      %s1095 = vtos %v1094
      %s1096 = sadd.f32 %s1095, 1e-08
      %v1097 = vstv %s1096
      %v1098 = vrcp.pop %v1097
      %v1099 = vmul.f32 %v1097, %v1098
      %v1100 = vsub.f32 1.0, %v1099
      %v1101 = vmul.f32 %v1098, %v1100
      %v1102 = vadd.f32 %v1098, %v1101
      %vm1103 = vweird.f32 %v1097
      %vm1104 = vweird.f32 %v1098
      %vm1105 = vmor %vm1103, %vm1104
      %v1106 = vsel %vm1105, %v1098, %v1102
      %v1107 = vand.u32 2147483647, %v1097
      %vm1108 = vcmp.eq.f32.partialorder %v1107, 8.507059e+37
      %v1109 = vand.u32 %v1097, 2147483648
      %v1110 = vor.u32 1.1754944e-38, %v1109
      %v1111 = vsel %vm1108, %v1110, %v1106
      %s1112 = vtos %v1111
      %s1113 = smul.f32 1e-08, %s1112
      %s1114 = sadd.f32 %s1080, %s1113
      %s1115 = sadd.f32 %s1080, 1e-08
      %v1116 = vstv %s1115
      %v1117 = vrcp.pop %v1116
      %v1118 = vmul.f32 %v1116, %v1117
      %v1119 = vsub.f32 1.0, %v1118
      %v1120 = vmul.f32 %v1117, %v1119
      %v1121 = vadd.f32 %v1117, %v1120
      %vm1122 = vweird.f32 %v1116
      %vm1123 = vweird.f32 %v1117
      %vm1124 = vmor %vm1122, %vm1123
      %v1125 = vsel %vm1124, %v1117, %v1121
      %v1126 = vand.u32 2147483647, %v1116
      %vm1127 = vcmp.eq.f32.partialorder %v1126, 8.507059e+37
      %v1128 = vand.u32 %v1116, 2147483648
      %v1129 = vor.u32 1.1754944e-38, %v1128
      %v1130 = vsel %vm1127, %v1129, %v1125
      %s1131 = vtos %v1130
      %s1132 = smul.f32 1e-08, %s1131
      %s1133 = sadd.f32 %s1095, %s1132
      %s1134 = smin.f32 %s1114, %s1133
      %s1135 = smul.f32 %s1065, %s1134
      %v1136 = vstv %s1135
      %1137 = vst [vmem:[%s276] sm:$0xff] %v1136
      %v1138 = vstv %s522
      %1139 = vst [vmem:[%s280] sm:$0xff] %v1138
      %p1140 = scmp.lt.s32.totalorder %s18, 1
      %s1141 = scalar_select %p1140, %s18, 1
      %s1142 = smul.addr %s1141, 8
      %s1143 = scalar_lea.vmem %s5, %s1142
      %p1144 = scmp.lt.s32.totalorder %s18, 1
      %s1145 = scalar_select %p1144, %s18, 1
      %s1146 = smul.addr %s1145, 8
      %s1147 = scalar_lea.vmem %s6, %s1146
      // Predicated region
      $region41: #{loss_totally.1} parent=39 // pred_check
        %p1148 = pneg %p151
      $region42: #{loss_totally.1} parent=39 // pred_check_branch
        %1150 = sbr.rel (%p1148) target = $region44
      $region43: #{loss_totally.1} parent=39 // pred_region
        _
      $region44: #{loss_totally.1} parent=39 // pred_fallthru
        _
      // Predicated region
      $region45: #{loss_totally.1} parent=39 // pred_check
        %p1151 = pneg %p177
      $region46: #{loss_totally.1} parent=39 // pred_check_branch
        %1153 = sbr.rel (%p1151) target = $region48
      $region47: #{loss_totally.1} parent=39 // pred_region
        _
      $region48: #{loss_totally.1} parent=39 // pred_fallthru
        _
    $region40: #{loss_totally.1} parent=5 // pred_fallthru
      _
    %p1154 = scmp.le.s32.totalorder 2, %s13
    // Predicated region
    $region49: #{loss_totally.1} parent=5 // pred_check
      %p1155 = pneg %p1154
    $region50: #{loss_totally.1} parent=5 // pred_check_branch
      %1157 = sbr.rel (%p1155) target = $region52
    $region51: #{loss_totally.1} parent=5 // pred_region
      %s1158 = ssub.s32 %s13, 2
      // Predicated region
      $region53: #{loss_totally.1} parent=51 // pred_check
        %p1159 = pneg %p157
      $region54: #{loss_totally.1} parent=51 // pred_check_branch
        %1161 = sbr.rel (%p1159) target = $region56
      $region55: #{loss_totally.1} parent=51 // pred_region
        %p1162 = scmp.lt.s32.totalorder %s19, 1
        %s1163 = scalar_select %p1162, %s19, 1
        %s1164 = smul.addr %s1163, 8
        %s1165 = scalar_lea.vmem %s5, %s1164
      $region56: #{loss_totally.1} parent=51 // pred_fallthru
        _
      // Predicated region
      $region57: #{loss_totally.1} parent=51 // pred_check
        %p1166 = pneg %p183
      $region58: #{loss_totally.1} parent=51 // pred_check_branch
        %1168 = sbr.rel (%p1166) target = $region60
      $region59: #{loss_totally.1} parent=51 // pred_region
        %p1169 = scmp.lt.s32.totalorder %s19, 1
        %s1170 = scalar_select %p1169, %s19, 1
        %s1171 = smul.addr %s1170, 8
        %s1172 = scalar_lea.vmem %s6, %s1171
      $region60: #{loss_totally.1} parent=51 // pred_fallthru
        _
    $region52: #{loss_totally.1} parent=5 // pred_fallthru
      _
  $region6: #{loss_totally.1} parent=0 // loop_footer
    %s17 = sadd.s32 1, %s13
  $region7: #{loss_totally.1} parent=0 // loop_footer_branch
    %12 = sbr.rel target = $region3
  $region8: #{loss_totally.1} parent=0 // loop_exit
    _

</llo_original>
